<compile_context>
chip_gen: v5e
topology: v5e:2x2
jax: 0.10.0
libtpu: 0.0.40
codegen_flags: <defaults>
</compile_context>

<pallas_src>
import math
from functools import partial

import numpy as np
import jax
import jax.numpy as jnp
from jax.experimental import pallas as pl
from jax.experimental.pallas import tpu as pltpu


# ----------------------------------------------------------------------------
# Pallas kernel: fused  y = x @ W  ->  per-cluster max (+ bias), written into the
# output block owned by this tile (scalar-prefetched, data-dependent out index_map).
# grid = (cout_chunks ["parallel"], point_tiles ["arbitrary"]).
# ----------------------------------------------------------------------------
def _pool_kernel(scan_steps,
                 tile_block_ref,   # SMEM (n_tiles,) i32  -- scalar prefetch
                 seg_row_ref,      # VMEM (1, TN)  i32    -- local cluster id (lanes)
                 seg_col_ref,      # VMEM (TN, 1)  i32    -- local cluster id (sublanes)
                 x_ref,            # VMEM (TN, Cin) bf16  -- packed point features
                 w_ref,            # VMEM (Cin, TC) bf16  -- projection weight chunk
                 b_ref,            # VMEM (1, TC)  f32    -- bias chunk
                 feat_ref):        # VMEM (TM, TC)        -- resident output block
    i = pl.program_id(1)
    tn = x_ref.shape[0]
    tm = feat_ref.shape[0]
    out_f32 = feat_ref.dtype == jnp.float32     # static at trace time

    # (re)initialize the resident output block with the bias whenever the output
    # block changes.  Each real output row receives exactly one one-hot add across
    # all tiles of its block, so init = bias is exact (max(y) + b == max(y + b)).
    prev_blk = tile_block_ref[jnp.maximum(i - 1, 0)]
    @pl.when(jnp.logical_or(i == 0, tile_block_ref[i] != prev_blk))
    def _():
        feat_ref[...] = jnp.broadcast_to(b_ref[...], feat_ref.shape).astype(feat_ref.dtype)

    # Linear projection on the MXU (bf16 operands, f32 accumulation).
    vals = jnp.dot(x_ref[...], w_ref[...],
                   preferred_element_type=jnp.float32)            # (TN, TC) f32

    # Segmented (per-cluster) inclusive prefix-max along the point (sublane) axis.
    # Clusters are contiguous inside the tile, so after ceil(log2(max_count)) steps
    # the last point ("tail") of every cluster holds the full cluster max.
    seg_c = seg_col_ref[...]                                       # (TN, 1) i32
    for k in range(scan_steps):                                    # static unroll
        sh = 1 << k
        prev_v = pltpu.roll(vals, sh, axis=0)
        prev_s = pltpu.roll(seg_c, sh, axis=0)
        vals = jnp.where(prev_s == seg_c, jnp.maximum(vals, prev_v), vals)

    # One-hot tail selector, built directly in bf16 (0/1 is exact in bf16):
    # row m picks the tail point of local cluster m.  Padding lanes have seg == -1
    # and are never selected (and the same-segment scan guard keeps their values
    # from propagating into real clusters).
    seg_r = seg_row_ref[...]                                       # (1, TN) i32
    lane = jax.lax.broadcasted_iota(jnp.int32, (1, tn), 1)
    tail = jnp.logical_or(seg_r != pltpu.roll(seg_r, tn - 1, axis=1),  # seg[p] != seg[p+1]
                          lane == tn - 1)
    row_ids = jax.lax.broadcasted_iota(jnp.int32, (tm, tn), 0)
    sel = jnp.logical_and(row_ids == seg_r, tail).astype(jnp.bfloat16)  # (TM, TN) bf16

    # bf16-native selection.  hi/lo split reconstructs the selected f32 value to
    # ~2^-17 relative error (two bf16 MXU passes, f32 accumulate).  Clusters absent
    # from this tile have an all-zero selector row -> contribute exactly 0.
    vals_hi = vals.astype(jnp.bfloat16)
    contrib = jnp.dot(sel, vals_hi, preferred_element_type=jnp.float32)
    if out_f32:
        vals_lo = (vals - vals_hi.astype(jnp.float32)).astype(jnp.bfloat16)
        contrib = contrib + jnp.dot(sel, vals_lo, preferred_element_type=jnp.float32)
    feat_ref[...] += contrib.astype(feat_ref.dtype)


# ----------------------------------------------------------------------------
# Host-side bookkeeping: pack cluster-sorted points into TN-point tiles so that
# no cluster straddles a tile and each tile maps into a single TM-row output block.
# ----------------------------------------------------------------------------
def _pack_clusters(cluster, counts, tn, tm):
    counts = np.asarray(counts, np.int64)
    m = counts.shape[0]
    n = int(counts.sum())
    assert m > 0
    assert int(counts.max()) <= tn, "a cluster has more points than one tile"
    order = np.argsort(cluster, kind="stable")        # cluster-sorted point indices
    idx_ptr = np.concatenate([[0], np.cumsum(counts)])

    slot_start = np.zeros(m, np.int64)
    tile_blocks = []
    cur_pts, cur_blk = tn, -1
    for c in range(m):                                # O(M) host loop (bookkeeping only)
        blk = c // tm
        cnt = int(counts[c])
        if blk != cur_blk or cur_pts + cnt > tn:
            tile_blocks.append(blk)
            cur_blk, cur_pts = blk, 0
        slot_start[c] = (len(tile_blocks) - 1) * tn + cur_pts
        cur_pts += cnt
    n_tiles = len(tile_blocks)
    n_pack = n_tiles * tn

    within = np.arange(n, dtype=np.int64) - np.repeat(idx_ptr[:-1], counts)
    slots = np.repeat(slot_start, counts) + within
    # NOTE: padding slots alias point row 0 of the feature matrix (must be finite);
    # they carry seg == -1 so they are never selected and never propagate in the scan.
    perm = np.zeros(n_pack, np.int64)
    perm[slots] = order
    seg_local = np.full(n_pack, -1, np.int32)
    seg_local[slots] = np.repeat((np.arange(m) % tm).astype(np.int32), counts)

    max_count = int(counts.max())
    scan_steps = int(math.ceil(math.log2(max_count))) if max_count > 1 else 0
    n_blocks = (m + tm - 1) // tm
    return (perm.astype(np.int32), seg_local,
            np.asarray(tile_blocks, np.int32), n_tiles, n_blocks, scan_steps)


def _num_tensorcores():
    """Best-effort TensorCore count (1 on v5e/v6e, 2 on v7x)."""
    try:
        d = jax.devices()[0]
        nc = getattr(d, "num_cores", None)
        if nc:
            return int(nc)
        kind = str(getattr(d, "device_kind", "")).lower()
        return 2 if "v7" in kind else 1
    except Exception:
        return 1


def _choose_cout_tiling(cout, n_cores):
    # Lane-dense output blocks (multiple of 128) when the padding overhead is small.
    cout_pad = cout
    if cout % 128 != 0 and cout > 64:
        cout_pad = ((cout + 127) // 128) * 128
    # Single C_out chunk on 1-TC chips (v5e/v6e): the leading "parallel" axis buys
    # nothing there and splitting would replay x streaming / scan / selector per chunk.
    # On 2-TC chips (v7x) split into two 128-lane-dense chunks so both cores are busy.
    if n_cores >= 2 and cout_pad % 256 == 0:
        tc = cout_pad // 2
    else:
        tc = cout_pad
    return cout_pad, tc


def serialized_pooling_project_reduce(feat, w, bias, cluster, counts, *,
                                      tn=1024, tm=256, out_dtype=jnp.float32):
    """segment_max(feat @ w + bias, cluster) fused in one Pallas kernel.
    Returns (M, C_out) in `out_dtype`."""
    n, cin = feat.shape
    cout = w.shape[1]
    m = int(np.asarray(counts).shape[0])
    assert tn % 128 == 0
    tm = max(8, min((tm // 8) * 8, ((m + 7) // 8) * 8))   # multiple of 8, not >> M
    n_cores = _num_tensorcores()
    cout_pad, tc = _choose_cout_tiling(cout, n_cores)
    n_cblk = cout_pad // tc

    perm, seg_local, tile_block, n_tiles, n_blocks, scan_steps = \
        _pack_clusters(np.asarray(cluster), np.asarray(counts), tn, tm)

    # Cast to bf16 BEFORE the permutation gather (halves the gather's HBM traffic).
    x_pack = jnp.asarray(feat).astype(jnp.bfloat16)[jnp.asarray(perm)]   # (n_pack, Cin)
    w_bf = jnp.zeros((cin, cout_pad), jnp.bfloat16).at[:, :cout].set(
        jnp.asarray(w).astype(jnp.bfloat16))
    b_f32 = jnp.zeros((1, cout_pad), jnp.float32).at[0, :cout].set(
        jnp.asarray(bias, jnp.float32).reshape(-1))
    seg_row = jnp.asarray(seg_local).reshape(1, -1)
    seg_col = jnp.asarray(seg_local).reshape(-1, 1)
    tile_block = jnp.asarray(tile_block)

    # VMEM budget: double-buffered IO + kernel temporaries; clamp well below the
    # v7x 64 MiB / TC physical budget.
    io_bytes = 2 * (tn * cin * 2 + cin * tc * 2 + 8 * tn * 4 + tn * 128 * 4
                    + 8 * 128 * 4 + tm * tc * 4)
    tmp_bytes = 4 * tn * max(tc, 128) * 4 + 2 * tm * tn * 2 + tm * tn * 4
    vmem_limit = int(min(max(2 * (io_bytes + tmp_bytes), 8 << 20), 32 << 20))

    feat_pad = pl.pallas_call(
        partial(_pool_kernel, scan_steps),
        out_shape=jax.ShapeDtypeStruct((n_blocks * tm, cout_pad), out_dtype),
        grid_spec=pltpu.PrefetchScalarGridSpec(
            num_scalar_prefetch=1,
            grid=(n_cblk, n_tiles),
            in_specs=[
                pl.BlockSpec((1, tn), lambda c, i, tb: (0, i)),      # cluster ids (lanes)
                pl.BlockSpec((tn, 1), lambda c, i, tb: (i, 0)),      # cluster ids (sublanes)
                pl.BlockSpec((tn, cin), lambda c, i, tb: (i, 0)),    # packed bf16 features
                pl.BlockSpec((cin, tc), lambda c, i, tb: (0, c)),    # weight chunk
                pl.BlockSpec((1, tc), lambda c, i, tb: (0, c)),      # bias chunk
            ],
            out_specs=pl.BlockSpec((tm, tc), lambda c, i, tb: (tb[i], c)),
        ),
        compiler_params=pltpu.CompilerParams(
            dimension_semantics=("parallel", "arbitrary"),
            vmem_limit_bytes=vmem_limit),
    )(tile_block, seg_row, seg_col, x_pack, w_bf, b_f32)
    return feat_pad[:m, :cout]


# ----------------------------------------------------------------------------
# Host-side glue reproducing SerializedPooling.forward bookkeeping.
# ----------------------------------------------------------------------------
def _z_order_encode(grid_coord, batch, depth):
    gc = np.asarray(grid_coord, dtype=np.int64)
    key = np.zeros(gc.shape[0], dtype=np.int64)
    for bit in range(depth):
        for d in range(3):
            key |= ((gc[:, d] >> bit) & 1) << (3 * bit + d)
    return key | (np.asarray(batch, np.int64) << (depth * 3))


def serialized_pooling_forward(point, w, bias, stride=2, tn=1024, tm=256):
    """Emulates SerializedPooling(in, out, stride=2, reduce='max').forward."""
    pooling_depth = (math.ceil(stride) - 1).bit_length()
    if pooling_depth > point['serialized_depth']:
        pooling_depth = 0

    code = point['serialized_code'] >> (pooling_depth * 3)      # (n_orders, N)
    code0 = np.asarray(code[0])
    _, cluster, counts = np.unique(code0, return_inverse=True, return_counts=True)
    indices = np.argsort(cluster, kind='stable')
    idx_ptr = np.concatenate([[0], np.cumsum(counts)])
    head_indices = indices[idx_ptr[:-1]]
    code = code[:, head_indices]
    order = np.argsort(code, axis=1)
    inverse = np.zeros_like(order)
    np.put_along_axis(inverse, order,
                      np.tile(np.arange(code.shape[1]), (code.shape[0], 1)),
                      axis=1)
    # shuffle_orders: permutation over a single serialization order is a no-op.

    m = code.shape[1]
    cluster_j = jnp.asarray(cluster.astype(np.int32))
    counts_f = jnp.asarray(counts, jnp.float32)[:, None]

    # Fused Linear + bias + segment-max on the TPU (bias folded into the kernel).
    feat = serialized_pooling_project_reduce(point['feat'], w, bias, cluster, counts,
                                             tn=tn, tm=tm)

    # segment mean of coordinates: (N, 3) is lane-sparse -> plain XLA.
    coord = jax.ops.segment_sum(jnp.asarray(point['coord'], jnp.float32),
                                cluster_j, num_segments=m) / counts_f

    out = dict(
        feat=feat,
        coord=coord,
        grid_coord=point['grid_coord'][head_indices] >> pooling_depth,
        serialized_code=code,
        serialized_order=order,
        serialized_inverse=inverse,
        serialized_depth=point['serialized_depth'] - pooling_depth,
        batch=point['batch'][head_indices],
        pooling_inverse=cluster,
    )
    # norm_layer / act_layer default to None in the module -> identity here.
    # TODO(synk): point.sparsify() builds a spconv.SparseConvTensor; no Pallas equivalent.
    return out, (cluster_j, m, counts_f)


if __name__ == "__main__":
    key = jax.random.PRNGKey(0)
    k1, k2, k3, k4 = jax.random.split(key, 4)

    # small synthetic batched point cloud: batch=2, 128 points each
    n_per, n_batch = 128, 2
    N = n_per * n_batch
    Cin, Cout = 16, 32

    grid_coord = np.asarray(
        jax.random.randint(k1, (N, 3), 0, 8), dtype=np.int64)        # depth = 3
    batch = np.repeat(np.arange(n_batch, dtype=np.int64), n_per)
    depth = int(grid_coord.max()).bit_length()
    code = _z_order_encode(grid_coord, batch, depth)[None, :]        # order = ('z',)

    feat = jax.random.normal(k2, (N, Cin), jnp.float32)
    coord = jnp.asarray(grid_coord, jnp.float32) * 0.05 \
        + 0.01 * jax.random.normal(k3, (N, 3), jnp.float32)

    point = dict(
        feat=feat, coord=coord, grid_coord=grid_coord, batch=batch,
        serialized_code=code,
        serialized_order=np.argsort(code, axis=1),
        serialized_inverse=np.argsort(np.argsort(code, axis=1), axis=1),
        serialized_depth=depth,
    )

    # deterministic nn.Linear(Cin, Cout) parameters (stored as (Cin, Cout))
    w = 0.1 * jax.random.normal(k4, (Cin, Cout), jnp.float32)
    bias = 0.01 * jnp.arange(Cout, dtype=jnp.float32)

    # small tiles so this tiny example still exercises multi-tile / multi-block paths
    # (production defaults are tn=1024, tm=256 per the perf review).
    out, (cluster_j, m, counts_f) = serialized_pooling_forward(
        point, w, bias, stride=2, tn=128, tm=64)
    jax.block_until_ready(out['feat'])
    jax.block_until_ready(out['coord'])

    # pure-JAX reference (same bf16 input stream as the kernel, f32 accumulation)
    xf = feat.astype(jnp.bfloat16).astype(jnp.float32)
    wf = w.astype(jnp.bfloat16).astype(jnp.float32)
    y_ref = jnp.dot(xf, wf, precision=jax.lax.Precision.HIGHEST) + bias
    ref_feat = jax.ops.segment_max(y_ref, cluster_j, num_segments=m)
    ref_coord = jax.ops.segment_sum(coord.astype(jnp.float32), cluster_j,
                                    num_segments=m) / counts_f

    assert np.allclose(np.asarray(out['feat']), np.asarray(ref_feat),
                       rtol=1e-4, atol=1e-4)
    assert np.allclose(np.asarray(out['coord']), np.asarray(ref_coord),
                       rtol=1e-5, atol=1e-5)

    print("KERNEL_OK")
</pallas_src>

<mosaic_0001>
module attributes {stable_mosaic.version = 11 : i64} {
  func.func @_pool_kernel(%arg0: i32, %arg1: i32, %arg2: memref<3xi32, #tpu.memory_space<smem>>, %arg3: memref<1x128xi32, #tpu.memory_space<vmem>>, %arg4: memref<128x1xi32, #tpu.memory_space<vmem>>, %arg5: memref<128x16xbf16, #tpu.memory_space<vmem>>, %arg6: memref<16x32xbf16, #tpu.memory_space<vmem>>, %arg7: memref<1x32xf32, #tpu.memory_space<vmem>>, %arg8: memref<64x32xf32, #tpu.memory_space<vmem>>) attributes {dimension_semantics = [#tpu.dimension_semantics<parallel>, #tpu.dimension_semantics<arbitrary>], iteration_bounds = array<i64: 1, 3>, scalar_prefetch = 1 : i64, scratch_operands = 0 : i64, tpu.core_type = #tpu.core_type<tc>, window_params = [{transform_indices = @transform_0, window_bounds = array<i64: 1, 128>}, {transform_indices = @transform_1, window_bounds = array<i64: 128, 1>}, {transform_indices = @transform_2, window_bounds = array<i64: 128, 16>}, {transform_indices = @transform_3, window_bounds = array<i64: 16, 32>}, {transform_indices = @transform_4, window_bounds = array<i64: 1, 32>}, {transform_indices = @transform_5, window_bounds = array<i64: 64, 32>}]} {
    %c1_i32 = arith.constant 1 : i32
    %0 = arith.subi %arg1, %c1_i32 : i32
    %c0_i32 = arith.constant 0 : i32
    %1 = arith.maxsi %0, %c0_i32 : i32
    %2 = arith.index_cast %1 : i32 to index
    %3 = memref.load %arg2[%2] : memref<3xi32, #tpu.memory_space<smem>>
    %c0_i32_0 = arith.constant 0 : i32
    %4 = arith.cmpi eq, %arg1, %c0_i32_0 : i32
    %5 = arith.index_cast %arg1 : i32 to index
    %6 = memref.load %arg2[%5] : memref<3xi32, #tpu.memory_space<smem>>
    %7 = arith.cmpi ne, %6, %3 : i32
    %8 = arith.ori %4, %7 : i1
    %9 = arith.extui %8 : i1 to i32
    %c0_i32_1 = arith.constant 0 : i32
    %10 = arith.cmpi ne, %9, %c0_i32_1 : i32
    scf.if %10 {
      %c0_20 = arith.constant 0 : index
      %c0_21 = arith.constant 0 : index
      %61 = vector.load %arg7[%c0_20, %c0_21] : memref<1x32xf32, #tpu.memory_space<vmem>>, vector<1x32xf32>
      %62 = vector.shape_cast %61 : vector<1x32xf32> to vector<1x32xf32>
      %63 = vector.broadcast %62 : vector<1x32xf32> to vector<64x32xf32>
      %c0_22 = arith.constant 0 : index
      %c0_23 = arith.constant 0 : index
      %64 = vector.load %arg8[%c0_22, %c0_23] : memref<64x32xf32, #tpu.memory_space<vmem>>, vector<64x32xf32>
      tpu.vector_store %arg8[%c0_22, %c0_23], %63 {strides = array<i32>} : memref<64x32xf32, #tpu.memory_space<vmem>>, vector<64x32xf32>,
    } else {
    }
    %c0 = arith.constant 0 : index
    %c0_2 = arith.constant 0 : index
    %11 = vector.load %arg5[%c0, %c0_2] : memref<128x16xbf16, #tpu.memory_space<vmem>>, vector<128x16xbf16>
    %c0_3 = arith.constant 0 : index
    %c0_4 = arith.constant 0 : index
    %12 = vector.load %arg6[%c0_3, %c0_4] : memref<16x32xbf16, #tpu.memory_space<vmem>>, vector<16x32xbf16>
    %cst = arith.constant dense<0.000000e+00> : vector<128x32xf32>
    %13 = tpu.matmul %11, %12, %cst {dimension_numbers = #tpu.dot_dimension_numbers<[1], [0], [0], [1], [0, 0, 1, 1], [], []>} : vector<128x16xbf16>, vector<16x32xbf16>, vector<128x32xf32> -> vector<128x32xf32>
    %c0_5 = arith.constant 0 : index
    %c0_6 = arith.constant 0 : index
    %14 = vector.load %arg4[%c0_5, %c0_6] : memref<128x1xi32, #tpu.memory_space<vmem>>, vector<128x1xi32>
    %c1_i32_7 = arith.constant 1 : i32
    %15 = tpu.dynamic_rotate %13 by %c1_i32_7 dim 0 : vector<128x32xf32>, i32 -> vector<128x32xf32>
    %c1_i32_8 = arith.constant 1 : i32
    %16 = tpu.dynamic_rotate %14 by %c1_i32_8 dim 0 : vector<128x1xi32>, i32 -> vector<128x1xi32>
    %17 = arith.cmpi eq, %16, %14 : vector<128x1xi32>
    %18 = arith.maximumf %13, %15 : vector<128x32xf32>
    %19 = vector.shape_cast %17 : vector<128x1xi1> to vector<128x1xi1>
    %20 = vector.broadcast %19 : vector<128x1xi1> to vector<128x32xi1>
    %21 = arith.select %20, %18, %13 : vector<128x32xi1>, vector<128x32xf32>
    %c2_i32 = arith.constant 2 : i32
    %22 = tpu.dynamic_rotate %21 by %c2_i32 dim 0 : vector<128x32xf32>, i32 -> vector<128x32xf32>
    %c2_i32_9 = arith.constant 2 : i32
    %23 = tpu.dynamic_rotate %14 by %c2_i32_9 dim 0 : vector<128x1xi32>, i32 -> vector<128x1xi32>
    %24 = arith.cmpi eq, %23, %14 : vector<128x1xi32>
    %25 = arith.maximumf %21, %22 : vector<128x32xf32>
    %26 = vector.shape_cast %24 : vector<128x1xi1> to vector<128x1xi1>
    %27 = vector.broadcast %26 : vector<128x1xi1> to vector<128x32xi1>
    %28 = arith.select %27, %25, %21 : vector<128x32xi1>, vector<128x32xf32>
    %c4_i32 = arith.constant 4 : i32
    %29 = tpu.dynamic_rotate %28 by %c4_i32 dim 0 : vector<128x32xf32>, i32 -> vector<128x32xf32>
    %c4_i32_10 = arith.constant 4 : i32
    %30 = tpu.dynamic_rotate %14 by %c4_i32_10 dim 0 : vector<128x1xi32>, i32 -> vector<128x1xi32>
    %31 = arith.cmpi eq, %30, %14 : vector<128x1xi32>
    %32 = arith.maximumf %28, %29 : vector<128x32xf32>
    %33 = vector.shape_cast %31 : vector<128x1xi1> to vector<128x1xi1>
    %34 = vector.broadcast %33 : vector<128x1xi1> to vector<128x32xi1>
    %35 = arith.select %34, %32, %28 : vector<128x32xi1>, vector<128x32xf32>
    %c0_11 = arith.constant 0 : index
    %c0_12 = arith.constant 0 : index
    %36 = vector.load %arg3[%c0_11, %c0_12] : memref<1x128xi32, #tpu.memory_space<vmem>>, vector<1x128xi32>
    %37 = tpu.iota {dimensions = array<i32: 1>} : vector<1x128xi32>
    %c127_i32 = arith.constant 127 : i32
    %38 = tpu.dynamic_rotate %36 by %c127_i32 dim 1 : vector<1x128xi32>, i32 -> vector<1x128xi32>
    %39 = arith.cmpi ne, %36, %38 : vector<1x128xi32>
    %c127_i32_13 = arith.constant 127 : i32
    %40 = vector.broadcast %c127_i32_13 : i32 to vector<1x128xi32>
    %41 = arith.cmpi eq, %37, %40 : vector<1x128xi32>
    %42 = arith.ori %39, %41 : vector<1x128xi1>
    %43 = tpu.iota {dimensions = array<i32: 0>} : vector<64x128xi32>
    %44 = vector.broadcast %36 : vector<1x128xi32> to vector<64x128xi32>
    %45 = arith.cmpi eq, %43, %44 : vector<64x128xi32>
    %46 = vector.broadcast %42 : vector<1x128xi1> to vector<64x128xi1>
    %47 = arith.andi %45, %46 : vector<64x128xi1>
    %48 = arith.extui %47 : vector<64x128xi1> to vector<64x128xi32>
    %49 = arith.sitofp %48 : vector<64x128xi32> to vector<64x128xf32>
    %50 = arith.truncf %49 : vector<64x128xf32> to vector<64x128xbf16>
    %51 = arith.truncf %35 : vector<128x32xf32> to vector<128x32xbf16>
    %cst_14 = arith.constant dense<0.000000e+00> : vector<64x32xf32>
    %52 = tpu.matmul %50, %51, %cst_14 {dimension_numbers = #tpu.dot_dimension_numbers<[1], [0], [0], [1], [0, 0, 1, 1], [], []>} : vector<64x128xbf16>, vector<128x32xbf16>, vector<64x32xf32> -> vector<64x32xf32>
    %53 = arith.extf %51 : vector<128x32xbf16> to vector<128x32xf32>
    %54 = arith.subf %35, %53 : vector<128x32xf32>
    %55 = arith.truncf %54 : vector<128x32xf32> to vector<128x32xbf16>
    %cst_15 = arith.constant dense<0.000000e+00> : vector<64x32xf32>
    %56 = tpu.matmul %50, %55, %cst_15 {dimension_numbers = #tpu.dot_dimension_numbers<[1], [0], [0], [1], [0, 0, 1, 1], [], []>} : vector<64x128xbf16>, vector<128x32xbf16>, vector<64x32xf32> -> vector<64x32xf32>
    %57 = arith.addf %52, %56 : vector<64x32xf32>
    %c0_16 = arith.constant 0 : index
    %c0_17 = arith.constant 0 : index
    %58 = vector.load %arg8[%c0_16, %c0_17] : memref<64x32xf32, #tpu.memory_space<vmem>>, vector<64x32xf32>
    %59 = arith.addf %58, %57 : vector<64x32xf32>
    %c0_18 = arith.constant 0 : index
    %c0_19 = arith.constant 0 : index
    %60 = vector.load %arg8[%c0_18, %c0_19] : memref<64x32xf32, #tpu.memory_space<vmem>>, vector<64x32xf32>
    tpu.vector_store %arg8[%c0_18, %c0_19], %59 {strides = array<i32>} : memref<64x32xf32, #tpu.memory_space<vmem>>, vector<64x32xf32>,
    return
  }
  func.func @transform_0(%arg0: i32, %arg1: i32, %arg2: memref<3xi32, #tpu.memory_space<smem>>) -> (i32, i32) {
    %c0_i32 = arith.constant 0 : i32
    %c0_i32_0 = arith.constant 0 : i32
    return %c0_i32, %arg1 : i32, i32
  }
  func.func @transform_1(%arg0: i32, %arg1: i32, %arg2: memref<3xi32, #tpu.memory_space<smem>>) -> (i32, i32) {
    %c0_i32 = arith.constant 0 : i32
    %c0_i32_0 = arith.constant 0 : i32
    return %arg1, %c0_i32 : i32, i32
  }
  func.func @transform_2(%arg0: i32, %arg1: i32, %arg2: memref<3xi32, #tpu.memory_space<smem>>) -> (i32, i32) {
    %c0_i32 = arith.constant 0 : i32
    %c0_i32_0 = arith.constant 0 : i32
    return %arg1, %c0_i32 : i32, i32
  }
  func.func @transform_3(%arg0: i32, %arg1: i32, %arg2: memref<3xi32, #tpu.memory_space<smem>>) -> (i32, i32) {
    %c0_i32 = arith.constant 0 : i32
    %c0_i32_0 = arith.constant 0 : i32
    return %c0_i32, %arg0 : i32, i32
  }
  func.func @transform_4(%arg0: i32, %arg1: i32, %arg2: memref<3xi32, #tpu.memory_space<smem>>) -> (i32, i32) {
    %c0_i32 = arith.constant 0 : i32
    %c0_i32_0 = arith.constant 0 : i32
    return %c0_i32, %arg0 : i32, i32
  }
  func.func @transform_5(%arg0: i32, %arg1: i32, %arg2: memref<3xi32, #tpu.memory_space<smem>>) -> (i32, i32) {
    %0 = arith.index_cast %arg1 : i32 to index
    %1 = memref.load %arg2[%0] : memref<3xi32, #tpu.memory_space<smem>>
    %c0_i32 = arith.constant 0 : i32
    return %1, %arg0 : i32, i32
  }
}

</mosaic_0001>

<llo_original>
// kernel: tpu_custom_call.1
$region0: #{tpu_custom_call.1}
  #allocation0 [shape = 'u32[]', space=smem, size = 0x4, offset = 0x4, fixed_abs, tag = 'smem constant byte address 0x4 - core index']
  #allocation1 [shape = 'u32[72,128]{1,0:T(1,128)}', space=vmem, size = 0x9000, scoped, tag = 'internal scratch']
  #allocation2 [shape = 's32[1]{0}', space=sflag, size = 0x4, scoped, tag = 'scoped memory for tpu_custom_call.1']
  #allocation3 [shape = 'u8[512]{0}', space=smem, size = 0x200, scoped, tag = 'prefetched SMEM operand 0']
  %s0 = inlined_call_operand.vmem [shape: s32[3], index: 0, kind: input, shape index: {}]
  %s1 = inlined_call_operand.vmem [shape: s32[1,384], index: 1, kind: input, shape index: {}]
  %s2 = inlined_call_operand.vmem [shape: s32[384,1], index: 2, kind: input, shape index: {}]
  %s3 = inlined_call_operand.vmem [shape: bf16[384,16], index: 3, kind: input, shape index: {}]
  %s4 = inlined_call_operand.vmem [shape: bf16[16,32], index: 4, kind: input, shape index: {}]
  %s5 = inlined_call_operand.vmem [shape: f32[1,32], index: 5, kind: input, shape index: {}]
  %s6 = inlined_call_operand.vmem [shape: f32[128,32], index: 6, kind: output, shape index: {}]
  %s7 = sld [smem:[#allocation0]]
  $region57: #{tpu_custom_call.1} parent=0
    _
  %s9 = ssub.s32 1, %s7
  %s10 = scalar_select 0, %s9, %s7
  %s12 = sshll.u32 %s0, 4
  %s13 = int_to_ptr.vmem [resolvable:$true] %s12
  %15 = dma.vmem_to_smem %s13, 16, [#allocation3], [#allocation2]
  %17 = dma.done [#allocation2], 16
  %18 = sfence
  loop: start=0, step=1, limit=5
  $region2: #{tpu_custom_call.1} parent=0 // loop_pre_header
    _
  $region3: #{tpu_custom_call.1} parent=0 // loop_header
    %s20 = sphi 0, %s24
    %p21 = scmp.ge.s32.totalorder %s20, 5
    %s27 = sphi 0, %s39
    %s28 = sphi 0, %s35
    %s29 = sphi 0, %s27
    %s30 = sphi 0, %s28
    %s31 = sphi 0, %s29
    %s32 = sphi 0, %s30
    %s42 = sphi 0, %s44
    %s45 = sphi 0, %s42
    %s46 = sphi 0, %s45
    %s62 = sphi 0, %s46
    %s68 = sphi 0, %s70
    %s71 = sphi 0, %s68
    %s72 = sphi 0, %s71
    %s88 = sphi 0, %s72
    %s94 = sphi 0, %s96
    %s97 = sphi 0, %s94
    %s98 = sphi 0, %s97
    %s114 = sphi 0, %s98
    %s120 = sphi 0, %s122
    %s123 = sphi 0, %s120
    %s124 = sphi 0, %s123
    %s140 = sphi 0, %s124
    %s146 = sphi 0, %s148
    %s149 = sphi 0, %s146
    %s150 = sphi 0, %s149
    %s166 = sphi 0, %s150
    %s176 = sphi 0, %s178
    %s179 = sphi 0, %s176
    %s180 = sphi 0, %s179
    %s196 = sphi 0, %s180
  $region4: #{tpu_custom_call.1} parent=0 // loop_header_branch
    %23 = sbr.rel (%p21) target = $region8
  $region5: #{tpu_custom_call.1} parent=0 // loop_body
    %s25 = ssub.s32 %s20, 1
    %s26 = ssub.s32 %s20, 2
    %s33 = sadd.s32 1, %s28
    %p34 = scmp.ge.s32.totalorder %s33, 3
    %s35 = scalar_select %p34, 0, %s33
    %s36 = sadd.s32 1, %s27
    %s37 = scalar_select %p34, %s36, %s27
    %p38 = scmp.ge.s32.totalorder %s37, 1
    %s39 = scalar_select %p38, 0, %s37
    %s40 = ssub.s32 %s28, %s35
    %p41 = scmp.eq.s32.totalorder %s40, 0
    %s43 = sadd.s32 %s42, 1
    %s44 = scalar_select %p41, %s42, %s43
    %p47 = pneg %p41
    %p48 = scmp.eq.s32.totalorder %s20, 2
    %p49 = por %p47, %p48
    %p50 = scmp.ne.s32.totalorder %s42, %s45
    %p51 = scmp.eq.s32.totalorder %s20, 0
    %p52 = por %p50, %p51
    %p53 = scmp.ne.s32.totalorder %s42, %s45
    %p54 = scmp.eq.s32.totalorder %s25, 2
    %p55 = por %p53, %p54
    %p56 = scmp.ne.s32.totalorder %s45, %s46
    %p57 = scmp.eq.s32.totalorder %s25, 0
    %p58 = por %p56, %p57
    %p59 = scmp.ne.s32.totalorder %s45, %s46
    %p60 = scmp.eq.s32.totalorder %s26, 2
    %p61 = por %p59, %p60
    %p63 = scmp.ne.s32.totalorder %s46, %s62
    %p64 = scmp.eq.s32.totalorder %s26, 0
    %p65 = por %p63, %p64
    %s66 = ssub.s32 %s28, %s35
    %p67 = scmp.eq.s32.totalorder %s66, 0
    %s69 = sadd.s32 %s68, 1
    %s70 = scalar_select %p67, %s68, %s69
    %p73 = pneg %p67
    %p74 = scmp.eq.s32.totalorder %s20, 2
    %p75 = por %p73, %p74
    %p76 = scmp.ne.s32.totalorder %s68, %s71
    %p77 = scmp.eq.s32.totalorder %s20, 0
    %p78 = por %p76, %p77
    %p79 = scmp.ne.s32.totalorder %s68, %s71
    %p80 = scmp.eq.s32.totalorder %s25, 2
    %p81 = por %p79, %p80
    %p82 = scmp.ne.s32.totalorder %s71, %s72
    %p83 = scmp.eq.s32.totalorder %s25, 0
    %p84 = por %p82, %p83
    %p85 = scmp.ne.s32.totalorder %s71, %s72
    %p86 = scmp.eq.s32.totalorder %s26, 2
    %p87 = por %p85, %p86
    %p89 = scmp.ne.s32.totalorder %s72, %s88
    %p90 = scmp.eq.s32.totalorder %s26, 0
    %p91 = por %p89, %p90
    %s92 = ssub.s32 %s28, %s35
    %p93 = scmp.eq.s32.totalorder %s92, 0
    %s95 = sadd.s32 %s94, 1
    %s96 = scalar_select %p93, %s94, %s95
    %p99 = pneg %p93
    %p100 = scmp.eq.s32.totalorder %s20, 2
    %p101 = por %p99, %p100
    %p102 = scmp.ne.s32.totalorder %s94, %s97
    %p103 = scmp.eq.s32.totalorder %s20, 0
    %p104 = por %p102, %p103
    %p105 = scmp.ne.s32.totalorder %s94, %s97
    %p106 = scmp.eq.s32.totalorder %s25, 2
    %p107 = por %p105, %p106
    %p108 = scmp.ne.s32.totalorder %s97, %s98
    %p109 = scmp.eq.s32.totalorder %s25, 0
    %p110 = por %p108, %p109
    %p111 = scmp.ne.s32.totalorder %s97, %s98
    %p112 = scmp.eq.s32.totalorder %s26, 2
    %p113 = por %p111, %p112
    %p115 = scmp.ne.s32.totalorder %s98, %s114
    %p116 = scmp.eq.s32.totalorder %s26, 0
    %p117 = por %p115, %p116
    %s118 = ssub.s32 %s27, %s39
    %p119 = scmp.eq.s32.totalorder %s118, 0
    %s121 = sadd.s32 %s120, 1
    %s122 = scalar_select %p119, %s120, %s121
    %p125 = pneg %p119
    %p126 = scmp.eq.s32.totalorder %s20, 2
    %p127 = por %p125, %p126
    %p128 = scmp.ne.s32.totalorder %s120, %s123
    %p129 = scmp.eq.s32.totalorder %s20, 0
    %p130 = por %p128, %p129
    %p131 = scmp.ne.s32.totalorder %s120, %s123
    %p132 = scmp.eq.s32.totalorder %s25, 2
    %p133 = por %p131, %p132
    %p134 = scmp.ne.s32.totalorder %s123, %s124
    %p135 = scmp.eq.s32.totalorder %s25, 0
    %p136 = por %p134, %p135
    %p137 = scmp.ne.s32.totalorder %s123, %s124
    %p138 = scmp.eq.s32.totalorder %s26, 2
    %p139 = por %p137, %p138
    %p141 = scmp.ne.s32.totalorder %s124, %s140
    %p142 = scmp.eq.s32.totalorder %s26, 0
    %p143 = por %p141, %p142
    %s144 = ssub.s32 %s27, %s39
    %p145 = scmp.eq.s32.totalorder %s144, 0
    %s147 = sadd.s32 %s146, 1
    %s148 = scalar_select %p145, %s146, %s147
    %p151 = pneg %p145
    %p152 = scmp.eq.s32.totalorder %s20, 2
    %p153 = por %p151, %p152
    %p154 = scmp.ne.s32.totalorder %s146, %s149
    %p155 = scmp.eq.s32.totalorder %s20, 0
    %p156 = por %p154, %p155
    %p157 = scmp.ne.s32.totalorder %s146, %s149
    %p158 = scmp.eq.s32.totalorder %s25, 2
    %p159 = por %p157, %p158
    %p160 = scmp.ne.s32.totalorder %s149, %s150
    %p161 = scmp.eq.s32.totalorder %s25, 0
    %p162 = por %p160, %p161
    %p163 = scmp.ne.s32.totalorder %s149, %s150
    %p164 = scmp.eq.s32.totalorder %s26, 2
    %p165 = por %p163, %p164
    %p167 = scmp.ne.s32.totalorder %s150, %s166
    %p168 = scmp.eq.s32.totalorder %s26, 0
    %p169 = por %p167, %p168
    %s170 = sld [smem:[#allocation3 + %s28]]
    %s171 = sld [smem:[#allocation3 + %s35]]
    %s172 = ssub.s32 %s170, %s171
    %s173 = ssub.s32 %s27, %s39
    %s174 = sor.u32 %s172, %s173
    %p175 = scmp.eq.s32.totalorder %s174, 0
    %s177 = sadd.s32 %s176, 1
    %s178 = scalar_select %p175, %s176, %s177
    %p181 = pneg %p175
    %p182 = scmp.eq.s32.totalorder %s20, 2
    %p183 = por %p181, %p182
    %p184 = scmp.ne.s32.totalorder %s176, %s179
    %p185 = scmp.eq.s32.totalorder %s20, 0
    %p186 = por %p184, %p185
    %p187 = scmp.ne.s32.totalorder %s176, %s179
    %p188 = scmp.eq.s32.totalorder %s25, 2
    %p189 = por %p187, %p188
    %p190 = scmp.ne.s32.totalorder %s179, %s180
    %p191 = scmp.eq.s32.totalorder %s25, 0
    %p192 = por %p190, %p191
    %p193 = scmp.ne.s32.totalorder %s179, %s180
    %p194 = scmp.eq.s32.totalorder %s26, 2
    %p195 = por %p193, %p194
    %p197 = scmp.ne.s32.totalorder %s180, %s196
    %p198 = scmp.eq.s32.totalorder %s26, 0
    %p199 = por %p197, %p198
    %p200 = scmp.le.s32.totalorder 1, %s20
    %p201 = scmp.lt.s32.totalorder %s20, 4
    %p202 = pnand %p200, %p201
    %p203 = pneg %p202
    // Predicated region
    $region9: #{tpu_custom_call.1} parent=5 // pred_check
      _
    $region10: #{tpu_custom_call.1} parent=5 // pred_check_branch
      %205 = sbr.rel (%p202) target = $region12
    $region11: #{tpu_custom_call.1} parent=5 // pred_region
      %s206 = ssub.s32 %s20, 1
      // Predicated region
      $region13: #{tpu_custom_call.1} parent=11 // pred_check
        %p207 = pneg %p136
      $region14: #{tpu_custom_call.1} parent=11 // pred_check_branch
        %209 = sbr.rel (%p207) target = $region16
      $region15: #{tpu_custom_call.1} parent=11 // pred_region
        %p210 = scmp.lt.s32.totalorder %s29, 0
        %s211 = scalar_select %p210, %s29, 0
        %s212 = smul.addr %s211, 4
        %s213 = scalar_lea.vmem %s4, %s212
      $region16: #{tpu_custom_call.1} parent=11 // pred_fallthru
        _
      // Predicated region
      $region17: #{tpu_custom_call.1} parent=11 // pred_check
        %p214 = pneg %p162
      $region18: #{tpu_custom_call.1} parent=11 // pred_check_branch
        %216 = sbr.rel (%p214) target = $region20
      $region19: #{tpu_custom_call.1} parent=11 // pred_region
        %p217 = scmp.lt.s32.totalorder %s29, 0
        %s218 = scalar_select %p217, %s29, 0
        %s219 = scalar_lea.vmem %s5, %s218
      $region20: #{tpu_custom_call.1} parent=11 // pred_fallthru
        _
    $region12: #{tpu_custom_call.1} parent=5 // pred_fallthru
      _
    %p220 = scmp.lt.s32.totalorder %s20, 3
    // Predicated region
    $region21: #{tpu_custom_call.1} parent=5 // pred_check
      %p221 = pneg %p220
    $region22: #{tpu_custom_call.1} parent=5 // pred_check_branch
      %223 = sbr.rel (%p221) target = $region24
    $region23: #{tpu_custom_call.1} parent=5 // pred_region
      // Predicated region
      $region25: #{tpu_custom_call.1} parent=23 // pred_check
        %p224 = pneg %p52
      $region26: #{tpu_custom_call.1} parent=23 // pred_check_branch
        %226 = sbr.rel (%p224) target = $region28
      $region27: #{tpu_custom_call.1} parent=23 // pred_region
        %p227 = scmp.lt.s32.totalorder %s28, 2
        %s228 = scalar_select %p227, %s28, 2
        %s229 = scalar_lea.vmem %s1, %s228
      $region28: #{tpu_custom_call.1} parent=23 // pred_fallthru
        _
      // Predicated region
      $region29: #{tpu_custom_call.1} parent=23 // pred_check
        %p230 = pneg %p78
      $region30: #{tpu_custom_call.1} parent=23 // pred_check_branch
        %232 = sbr.rel (%p230) target = $region32
      $region31: #{tpu_custom_call.1} parent=23 // pred_region
        %s233 = smul.u32 16, %s28
        %p234 = scmp.lt.s32.totalorder %s233, 47
        %s235 = scalar_select %p234, %s233, 47
        %s236 = smul.addr %s235, 8
        %s237 = scalar_lea.vmem %s2, %s236
        %s238 = smul.u32 16, %s28
      $region32: #{tpu_custom_call.1} parent=23 // pred_fallthru
        _
      // Predicated region
      $region33: #{tpu_custom_call.1} parent=23 // pred_check
        %p239 = pneg %p104
      $region34: #{tpu_custom_call.1} parent=23 // pred_check_branch
        %241 = sbr.rel (%p239) target = $region36
      $region35: #{tpu_custom_call.1} parent=23 // pred_region
        %s242 = smul.u32 16, %s28
        %p243 = scmp.lt.s32.totalorder %s242, 47
        %s244 = scalar_select %p243, %s242, 47
        %s245 = smul.addr %s244, 4
        %s246 = scalar_lea.vmem %s3, %s245
        %s247 = smul.u32 16, %s28
      $region36: #{tpu_custom_call.1} parent=23 // pred_fallthru
        _
    $region24: #{tpu_custom_call.1} parent=5 // pred_fallthru
      _
    %p248 = scmp.le.s32.totalorder 1, %s20
    %p249 = scmp.lt.s32.totalorder %s20, 4
    %p250 = pnand %p248, %p249
    %p251 = pneg %p250
    // Predicated region
    $region37: #{tpu_custom_call.1} parent=5 // pred_check
      _
    $region38: #{tpu_custom_call.1} parent=5 // pred_check_branch
      %253 = sbr.rel (%p250) target = $region40
    $region39: #{tpu_custom_call.1} parent=5 // pred_region
      %s254 = ssub.s32 %s20, 1
      %p255 = scmp.lt.s32.totalorder %s30, 2
      %s256 = scalar_select %p255, %s30, 2
      %s257 = scalar_lea.vmem %s1, %s256
      %p258 = pneg %p58
      %p259 = pneg %p55
      %s260 = smul.u32 16, %s30
      %p261 = scmp.lt.s32.totalorder %s260, 47
      %s262 = scalar_select %p261, %s260, 47
      %s263 = smul.addr %s262, 8
      %s264 = scalar_lea.vmem %s2, %s263
      %p265 = pneg %p84
      %p266 = pneg %p81
      %s267 = smul.u32 16, %s30
      %p268 = scmp.lt.s32.totalorder %s267, 47
      %s269 = scalar_select %p268, %s267, 47
      %s270 = smul.addr %s269, 4
      %s271 = scalar_lea.vmem %s3, %s270
      %p272 = pneg %p110
      %p273 = pneg %p107
      %p274 = scmp.lt.s32.totalorder %s29, 0
      %s275 = scalar_select %p274, %s29, 0
      %s276 = smul.addr %s275, 4
      %s277 = scalar_lea.vmem %s4, %s276
      %p278 = pneg %p136
      %p279 = pneg %p133
      %p280 = scmp.lt.s32.totalorder %s29, 0
      %s281 = scalar_select %p280, %s29, 0
      %s282 = scalar_lea.vmem %s5, %s281
      %p283 = pneg %p162
      %p284 = pneg %p159
      %p285 = pneg %p192
      %p286 = pneg %p189
      %s287 = sld [smem:[#allocation3 + %s30]]
      %s288 = smul.u32 8, %s287
      %p289 = scmp.lt.s32.totalorder %s288, 15
      %s290 = scalar_select %p289, %s288, 15
      %p291 = scmp.lt.s32.totalorder %s29, 0
      %s292 = scalar_select %p291, %s29, 0
      %s293 = sadd.s32 %s292, %s290
      %s294 = smul.addr %s293, 8
      %s295 = scalar_lea.vmem %s6, %s294
      %p296 = scmp.lt.s32.totalorder %s30, 2
      %s297 = scalar_select %p296, %s30, 2
      %s298 = scalar_lea.vmem %s1, %s297
      %s299 = smul.u32 16, %s30
      %p300 = scmp.lt.s32.totalorder %s299, 47
      %s301 = scalar_select %p300, %s299, 47
      %s302 = smul.addr %s301, 8
      %s303 = scalar_lea.vmem %s2, %s302
      %s304 = smul.u32 16, %s30
      %s305 = smul.u32 16, %s30
      %p306 = scmp.lt.s32.totalorder %s305, 47
      %s307 = scalar_select %p306, %s305, 47
      %s308 = smul.addr %s307, 4
      %s309 = scalar_lea.vmem %s3, %s308
      %s310 = smul.u32 16, %s30
      %p311 = scmp.lt.s32.totalorder %s29, 0
      %s312 = scalar_select %p311, %s29, 0
      %s313 = smul.addr %s312, 4
      %s314 = scalar_lea.vmem %s4, %s313
      %p315 = scmp.lt.s32.totalorder %s29, 0
      %s316 = scalar_select %p315, %s29, 0
      %s317 = scalar_lea.vmem %s5, %s316
      %s318 = sld [smem:[#allocation3 + %s30]]
      %s319 = smul.u32 8, %s318
      %p320 = scmp.lt.s32.totalorder %s319, 15
      %s321 = scalar_select %p320, %s319, 15
      %p322 = scmp.lt.s32.totalorder %s29, 0
      %s323 = scalar_select %p322, %s29, 0
      %s324 = sadd.s32 %s323, %s321
      %s325 = smul.addr %s324, 8
      %s326 = scalar_lea.vmem %s6, %s325
      %s327 = sld [smem:[#allocation3 + %s30]]
      %s328 = smul.u32 8, %s327
      %s330 = ssub.s32 %s30, 1
      %p331 = scmp.gt.s32.totalorder %s330, 0
      %s332 = scalar_select %p331, %s330, 0
      %s333 = sld [smem:[#allocation3 + %s332]]
      %p334 = scmp.eq.s32.totalorder %s30, 0
      %s335 = sld [smem:[#allocation3 + %s30]]
      %p336 = scmp.ne.s32.totalorder %s335, %s333
      %p337 = por %p334, %p336
      // Predicated region
      $region41: #{tpu_custom_call.1} parent=39 // pred_check
        %p338 = pneg %p337
      $region42: #{tpu_custom_call.1} parent=39 // pred_check_branch
        %340 = sbr.rel (%p338) target = $region44
      $region43: #{tpu_custom_call.1} parent=39 // pred_region
        %v341 = vld [vmem:[%s317] sm:$0x1]
        %v343 = vperm.slane %v341, 0
        %vm345 = vcmask 261120
        %346 = vst.msk [vmem:[%s326] sm:$0xff] %vm345, %v343
        %347 = vst.msk [vmem:[%s326 + $0x8] sm:$0xff] %vm345, %v343
        %348 = vst.msk [vmem:[%s326 + $0x10] sm:$0xff] %vm345, %v343
        %349 = vst.msk [vmem:[%s326 + $0x18] sm:$0xff] %vm345, %v343
        %350 = vst.msk [vmem:[%s326 + $0x20] sm:$0xff] %vm345, %v343
        %351 = vst.msk [vmem:[%s326 + $0x28] sm:$0xff] %vm345, %v343
        %352 = vst.msk [vmem:[%s326 + $0x30] sm:$0xff] %vm345, %v343
        %353 = vst.msk [vmem:[%s326 + $0x38] sm:$0xff] %vm345, %v343
      $region44: #{tpu_custom_call.1} parent=39 // pred_fallthru
        _
      %v354 = vld [vmem:[%s309] sm:$0xf]
      %v355 = vld [vmem:[%s309 + $0x4] sm:$0xf]
      %v356 = vld [vmem:[%s309 + $0x8] sm:$0xf]
      %v357 = vld [vmem:[%s309 + $0xc] sm:$0xf]
      %v358 = vld [vmem:[%s309 + $0x10] sm:$0xf]
      %v359 = vld [vmem:[%s309 + $0x14] sm:$0xf]
      %v360 = vld [vmem:[%s309 + $0x18] sm:$0xf]
      %v361 = vld [vmem:[%s309 + $0x1c] sm:$0xf]
      %v362 = vld [vmem:[%s309 + $0x20] sm:$0xf]
      %v363 = vld [vmem:[%s309 + $0x24] sm:$0xf]
      %v364 = vld [vmem:[%s309 + $0x28] sm:$0xf]
      %v365 = vld [vmem:[%s309 + $0x2c] sm:$0xf]
      %v366 = vld [vmem:[%s309 + $0x30] sm:$0xf]
      %v367 = vld [vmem:[%s309 + $0x34] sm:$0xf]
      %v368 = vld [vmem:[%s309 + $0x38] sm:$0xf]
      %v369 = vld [vmem:[%s309 + $0x3c] sm:$0xf]
      %v370 = vld [vmem:[%s314] sm:$0xf]
      %v371 = vld [vmem:[%s314 + $0x4] sm:$0xf]
      %v388 = vunpack.c.l.b16 %v354
      %v389 = vunpack.c.l.b16 %v355
      %v390 = vunpack.c.l.b16 %v356
      %v391 = vunpack.c.l.b16 %v357
      %v392 = vunpack.c.l.b16 %v358
      %v393 = vunpack.c.l.b16 %v359
      %v394 = vunpack.c.l.b16 %v360
      %v395 = vunpack.c.l.b16 %v361
      %v396 = vunpack.c.l.b16 %v362
      %v397 = vunpack.c.l.b16 %v363
      %v398 = vunpack.c.l.b16 %v364
      %v399 = vunpack.c.l.b16 %v365
      %v400 = vunpack.c.l.b16 %v366
      %v401 = vunpack.c.l.b16 %v367
      %v402 = vunpack.c.l.b16 %v368
      %v403 = vunpack.c.l.b16 %v369
      %v404 = vpack.c.b16 %v389, %v388
      %v405 = vpack.c.b16 %v391, %v390
      %v406 = vpack.c.b16 %v393, %v392
      %v407 = vpack.c.b16 %v395, %v394
      %v408 = vpack.c.b16 %v397, %v396
      %v409 = vpack.c.b16 %v399, %v398
      %v410 = vpack.c.b16 %v401, %v400
      %v411 = vpack.c.b16 %v403, %v402
      %v414 = vunpack.c.l.b16 %v370
      %v415 = vunpack.c.l.b16 %v371
      %v416 = vpack.c.b16 %v415, %v414
      %vm418 = vcmask 130048
      %v420 = vsel %vm418, %v404, 0
      %v423 = vsel %vm418, %v405, 0
      %v426 = vsel %vm418, %v406, 0
      %v429 = vsel %vm418, %v407, 0
      %v432 = vsel %vm418, %v408, 0
      %v435 = vsel %vm418, %v409, 0
      %v438 = vsel %vm418, %v410, 0
      %v441 = vsel %vm418, %v411, 0
      %443 = vmatpush.bf16.msra.mxu0 0
      %444 = vmatpush.bf16.msra.mxu0 0
      %445 = vmatpush.bf16.msra.mxu0 0
      %446 = vmatpush.bf16.msra.mxu0 0
      %447 = vmatpush.bf16.msra.mxu0 0
      %448 = vmatpush.bf16.msra.mxu0 0
      %449 = vmatpush.bf16.msra.mxu0 0
      %450 = vmatpush.bf16.msra.mxu0 %v416
      %451 = vmatmul.bf16.gmra.mxu0 %v420
      %v452 = vpop.f32.mrf.mxu0
      %v453 = vadd.f32 0.0, %v452
      %v454 = vpop.f32.mrf.mxu0
      %v455 = vadd.f32 0.0, %v454
      %456 = vmatmul.bf16.gmra.mxu0 %v423
      %v457 = vpop.f32.mrf.mxu0
      %v458 = vadd.f32 0.0, %v457
      %v459 = vpop.f32.mrf.mxu0
      %v460 = vadd.f32 0.0, %v459
      %461 = vmatmul.bf16.gmra.mxu0 %v426
      %v462 = vpop.f32.mrf.mxu0
      %v463 = vadd.f32 0.0, %v462
      %v464 = vpop.f32.mrf.mxu0
      %v465 = vadd.f32 0.0, %v464
      %466 = vmatmul.bf16.gmra.mxu0 %v429
      %v467 = vpop.f32.mrf.mxu0
      %v468 = vadd.f32 0.0, %v467
      %v469 = vpop.f32.mrf.mxu0
      %v470 = vadd.f32 0.0, %v469
      %471 = vmatmul.bf16.gmra.mxu0 %v432
      %v472 = vpop.f32.mrf.mxu0
      %v473 = vadd.f32 0.0, %v472
      %v474 = vpop.f32.mrf.mxu0
      %v475 = vadd.f32 0.0, %v474
      %476 = vmatmul.bf16.gmra.mxu0 %v435
      %v477 = vpop.f32.mrf.mxu0
      %v478 = vadd.f32 0.0, %v477
      %v479 = vpop.f32.mrf.mxu0
      %v480 = vadd.f32 0.0, %v479
      %481 = vmatmul.bf16.gmra.mxu0 %v438
      %v482 = vpop.f32.mrf.mxu0
      %v483 = vadd.f32 0.0, %v482
      %v484 = vpop.f32.mrf.mxu0
      %v485 = vadd.f32 0.0, %v484
      %486 = vmatmul.bf16.gmra.mxu0 %v441
      %v487 = vpop.f32.mrf.mxu0
      %v488 = vadd.f32 0.0, %v487
      %v489 = vpop.f32.mrf.mxu0
      %v490 = vadd.f32 0.0, %v489
      %491 = vdwg.mxu0
      %v492 = vld [vmem:[%s303] sm:$0xff]
      %v493 = vld [vmem:[%s303 + $0x8] sm:$0xff]
      %v494 = vld [vmem:[%s303 + $0x10] sm:$0xff]
      %v495 = vld [vmem:[%s303 + $0x18] sm:$0xff]
      %v496 = vld [vmem:[%s303 + $0x20] sm:$0xff]
      %v497 = vld [vmem:[%s303 + $0x28] sm:$0xff]
      %v498 = vld [vmem:[%s303 + $0x30] sm:$0xff]
      %v499 = vld [vmem:[%s303 + $0x38] sm:$0xff]
      %v500 = vld [vmem:[%s303 + $0x40] sm:$0xff]
      %v501 = vld [vmem:[%s303 + $0x48] sm:$0xff]
      %v502 = vld [vmem:[%s303 + $0x50] sm:$0xff]
      %v503 = vld [vmem:[%s303 + $0x58] sm:$0xff]
      %v504 = vld [vmem:[%s303 + $0x60] sm:$0xff]
      %v505 = vld [vmem:[%s303 + $0x68] sm:$0xff]
      %v506 = vld [vmem:[%s303 + $0x70] sm:$0xff]
      %v507 = vld [vmem:[%s303 + $0x78] sm:$0xff]
      %v508 = vrot.slane %v453, 7
      %v509 = vrot.slane %v455, 7
      %v510 = vrot.slane %v458, 7
      %v511 = vrot.slane %v460, 7
      %v512 = vrot.slane %v463, 7
      %v513 = vrot.slane %v465, 7
      %v514 = vrot.slane %v468, 7
      %v515 = vrot.slane %v470, 7
      %v516 = vrot.slane %v473, 7
      %v517 = vrot.slane %v475, 7
      %v518 = vrot.slane %v478, 7
      %v519 = vrot.slane %v480, 7
      %v520 = vrot.slane %v483, 7
      %v521 = vrot.slane %v485, 7
      %v522 = vrot.slane %v488, 7
      %v523 = vrot.slane %v490, 7
      %v524 = vlaneseq
      %v525 = vshrl.u32 %v524, 7
      %vm526 = vcmp.lt.s32.totalorder %v525, 1
      %v527 = vsel %vm526, %v522, %v523
      %v528 = vsel %vm526, %v521, %v522
      %v529 = vsel %vm526, %v520, %v521
      %v530 = vsel %vm526, %v519, %v520
      %v531 = vsel %vm526, %v518, %v519
      %v532 = vsel %vm526, %v517, %v518
      %v533 = vsel %vm526, %v516, %v517
      %v534 = vsel %vm526, %v515, %v516
      %v535 = vsel %vm526, %v514, %v515
      %v536 = vsel %vm526, %v513, %v514
      %v537 = vsel %vm526, %v512, %v513
      %v538 = vsel %vm526, %v511, %v512
      %v539 = vsel %vm526, %v510, %v511
      %v540 = vsel %vm526, %v509, %v510
      %v541 = vsel %vm526, %v508, %v509
      %v542 = vsel %vm526, %v523, %v508
      %v543 = vrot.slane %v492, 7
      %v544 = vrot.slane %v493, 7
      %v545 = vrot.slane %v494, 7
      %v546 = vrot.slane %v495, 7
      %v547 = vrot.slane %v496, 7
      %v548 = vrot.slane %v497, 7
      %v549 = vrot.slane %v498, 7
      %v550 = vrot.slane %v499, 7
      %v551 = vrot.slane %v500, 7
      %v552 = vrot.slane %v501, 7
      %v553 = vrot.slane %v502, 7
      %v554 = vrot.slane %v503, 7
      %v555 = vrot.slane %v504, 7
      %v556 = vrot.slane %v505, 7
      %v557 = vrot.slane %v506, 7
      %v558 = vrot.slane %v507, 7
      %v559 = vsel %vm526, %v557, %v558
      %v560 = vsel %vm526, %v556, %v557
      %v561 = vsel %vm526, %v555, %v556
      %v562 = vsel %vm526, %v554, %v555
      %v563 = vsel %vm526, %v553, %v554
      %v564 = vsel %vm526, %v552, %v553
      %v565 = vsel %vm526, %v551, %v552
      %v566 = vsel %vm526, %v550, %v551
      %v567 = vsel %vm526, %v549, %v550
      %v568 = vsel %vm526, %v548, %v549
      %v569 = vsel %vm526, %v547, %v548
      %v570 = vsel %vm526, %v546, %v547
      %v571 = vsel %vm526, %v545, %v546
      %v572 = vsel %vm526, %v544, %v545
      %v573 = vsel %vm526, %v543, %v544
      %v574 = vsel %vm526, %v558, %v543
      %vm575 = vcmp.eq.s32.totalorder %v574, %v492
      %vm576 = vcmp.eq.s32.totalorder %v573, %v493
      %vm577 = vcmp.eq.s32.totalorder %v572, %v494
      %vm578 = vcmp.eq.s32.totalorder %v571, %v495
      %vm579 = vcmp.eq.s32.totalorder %v570, %v496
      %vm580 = vcmp.eq.s32.totalorder %v569, %v497
      %vm581 = vcmp.eq.s32.totalorder %v568, %v498
      %vm582 = vcmp.eq.s32.totalorder %v567, %v499
      %vm583 = vcmp.eq.s32.totalorder %v566, %v500
      %vm584 = vcmp.eq.s32.totalorder %v565, %v501
      %vm585 = vcmp.eq.s32.totalorder %v564, %v502
      %vm586 = vcmp.eq.s32.totalorder %v563, %v503
      %vm587 = vcmp.eq.s32.totalorder %v562, %v504
      %vm588 = vcmp.eq.s32.totalorder %v561, %v505
      %vm589 = vcmp.eq.s32.totalorder %v560, %v506
      %vm590 = vcmp.eq.s32.totalorder %v559, %v507
      %v591 = vmax.f32 %v453, %v542
      %v592 = vmax.f32 %v455, %v541
      %v593 = vmax.f32 %v458, %v540
      %v594 = vmax.f32 %v460, %v539
      %v595 = vmax.f32 %v463, %v538
      %v596 = vmax.f32 %v465, %v537
      %v597 = vmax.f32 %v468, %v536
      %v598 = vmax.f32 %v470, %v535
      %v599 = vmax.f32 %v473, %v534
      %v600 = vmax.f32 %v475, %v533
      %v601 = vmax.f32 %v478, %v532
      %v602 = vmax.f32 %v480, %v531
      %v603 = vmax.f32 %v483, %v530
      %v604 = vmax.f32 %v485, %v529
      %v605 = vmax.f32 %v488, %v528
      %v606 = vmax.f32 %v490, %v527
      %v607 = vsel %vm575, 1, 0
      %v608 = vsel %vm576, 1, 0
      %v609 = vsel %vm577, 1, 0
      %v610 = vsel %vm578, 1, 0
      %v611 = vsel %vm579, 1, 0
      %v612 = vsel %vm580, 1, 0
      %v613 = vsel %vm581, 1, 0
      %v614 = vsel %vm582, 1, 0
      %v615 = vsel %vm583, 1, 0
      %v616 = vsel %vm584, 1, 0
      %v617 = vsel %vm585, 1, 0
      %v618 = vsel %vm586, 1, 0
      %v619 = vsel %vm587, 1, 0
      %v620 = vsel %vm588, 1, 0
      %v621 = vsel %vm589, 1, 0
      %v622 = vsel %vm590, 1, 0
      %623 = vset.pattern.permute.xlu0 0
      %624 = vperm.xlu0 %623, %v607
      %v625 = vpop.permute.xlu0 %624
      %626 = vset.pattern.permute.xlu0 0
      %627 = vperm.xlu0 %626, %v608
      %v628 = vpop.permute.xlu0 %627
      %629 = vset.pattern.permute.xlu0 0
      %630 = vperm.xlu0 %629, %v609
      %v631 = vpop.permute.xlu0 %630
      %632 = vset.pattern.permute.xlu0 0
      %633 = vperm.xlu0 %632, %v610
      %v634 = vpop.permute.xlu0 %633
      %635 = vset.pattern.permute.xlu0 0
      %636 = vperm.xlu0 %635, %v611
      %v637 = vpop.permute.xlu0 %636
      %638 = vset.pattern.permute.xlu0 0
      %639 = vperm.xlu0 %638, %v612
      %v640 = vpop.permute.xlu0 %639
      %641 = vset.pattern.permute.xlu0 0
      %642 = vperm.xlu0 %641, %v613
      %v643 = vpop.permute.xlu0 %642
      %644 = vset.pattern.permute.xlu0 0
      %645 = vperm.xlu0 %644, %v614
      %v646 = vpop.permute.xlu0 %645
      %647 = vset.pattern.permute.xlu0 0
      %648 = vperm.xlu0 %647, %v615
      %v649 = vpop.permute.xlu0 %648
      %650 = vset.pattern.permute.xlu0 0
      %651 = vperm.xlu0 %650, %v616
      %v652 = vpop.permute.xlu0 %651
      %653 = vset.pattern.permute.xlu0 0
      %654 = vperm.xlu0 %653, %v617
      %v655 = vpop.permute.xlu0 %654
      %656 = vset.pattern.permute.xlu0 0
      %657 = vperm.xlu0 %656, %v618
      %v658 = vpop.permute.xlu0 %657
      %659 = vset.pattern.permute.xlu0 0
      %660 = vperm.xlu0 %659, %v619
      %v661 = vpop.permute.xlu0 %660
      %662 = vset.pattern.permute.xlu0 0
      %663 = vperm.xlu0 %662, %v620
      %v664 = vpop.permute.xlu0 %663
      %665 = vset.pattern.permute.xlu0 0
      %666 = vperm.xlu0 %665, %v621
      %v667 = vpop.permute.xlu0 %666
      %668 = vset.pattern.permute.xlu0 0
      %669 = vperm.xlu0 %668, %v622
      %v670 = vpop.permute.xlu0 %669
      %vm671 = vcmp.eq.s32.totalorder %v625, 1
      %vm672 = vcmp.eq.s32.totalorder %v628, 1
      %vm673 = vcmp.eq.s32.totalorder %v631, 1
      %vm674 = vcmp.eq.s32.totalorder %v634, 1
      %vm675 = vcmp.eq.s32.totalorder %v637, 1
      %vm676 = vcmp.eq.s32.totalorder %v640, 1
      %vm677 = vcmp.eq.s32.totalorder %v643, 1
      %vm678 = vcmp.eq.s32.totalorder %v646, 1
      %vm679 = vcmp.eq.s32.totalorder %v649, 1
      %vm680 = vcmp.eq.s32.totalorder %v652, 1
      %vm681 = vcmp.eq.s32.totalorder %v655, 1
      %vm682 = vcmp.eq.s32.totalorder %v658, 1
      %vm683 = vcmp.eq.s32.totalorder %v661, 1
      %vm684 = vcmp.eq.s32.totalorder %v664, 1
      %vm685 = vcmp.eq.s32.totalorder %v667, 1
      %vm686 = vcmp.eq.s32.totalorder %v670, 1
      %v687 = vsel %vm671, %v591, %v453
      %v688 = vsel %vm672, %v592, %v455
      %v689 = vsel %vm673, %v593, %v458
      %v690 = vsel %vm674, %v594, %v460
      %v691 = vsel %vm675, %v595, %v463
      %v692 = vsel %vm676, %v596, %v465
      %v693 = vsel %vm677, %v597, %v468
      %v694 = vsel %vm678, %v598, %v470
      %v695 = vsel %vm679, %v599, %v473
      %v696 = vsel %vm680, %v600, %v475
      %v697 = vsel %vm681, %v601, %v478
      %v698 = vsel %vm682, %v602, %v480
      %v699 = vsel %vm683, %v603, %v483
      %v700 = vsel %vm684, %v604, %v485
      %v701 = vsel %vm685, %v605, %v488
      %v702 = vsel %vm686, %v606, %v490
      %v703 = vrot.slane %v687, 6
      %v704 = vrot.slane %v688, 6
      %v705 = vrot.slane %v689, 6
      %v706 = vrot.slane %v690, 6
      %v707 = vrot.slane %v691, 6
      %v708 = vrot.slane %v692, 6
      %v709 = vrot.slane %v693, 6
      %v710 = vrot.slane %v694, 6
      %v711 = vrot.slane %v695, 6
      %v712 = vrot.slane %v696, 6
      %v713 = vrot.slane %v697, 6
      %v714 = vrot.slane %v698, 6
      %v715 = vrot.slane %v699, 6
      %v716 = vrot.slane %v700, 6
      %v717 = vrot.slane %v701, 6
      %v718 = vrot.slane %v702, 6
      %vm719 = vcmp.lt.s32.totalorder %v525, 2
      %v720 = vsel %vm719, %v717, %v718
      %v721 = vsel %vm719, %v716, %v717
      %v722 = vsel %vm719, %v715, %v716
      %v723 = vsel %vm719, %v714, %v715
      %v724 = vsel %vm719, %v713, %v714
      %v725 = vsel %vm719, %v712, %v713
      %v726 = vsel %vm719, %v711, %v712
      %v727 = vsel %vm719, %v710, %v711
      %v728 = vsel %vm719, %v709, %v710
      %v729 = vsel %vm719, %v708, %v709
      %v730 = vsel %vm719, %v707, %v708
      %v731 = vsel %vm719, %v706, %v707
      %v732 = vsel %vm719, %v705, %v706
      %v733 = vsel %vm719, %v704, %v705
      %v734 = vsel %vm719, %v703, %v704
      %v735 = vsel %vm719, %v718, %v703
      %v736 = vrot.slane %v492, 6
      %v737 = vrot.slane %v493, 6
      %v738 = vrot.slane %v494, 6
      %v739 = vrot.slane %v495, 6
      %v740 = vrot.slane %v496, 6
      %v741 = vrot.slane %v497, 6
      %v742 = vrot.slane %v498, 6
      %v743 = vrot.slane %v499, 6
      %v744 = vrot.slane %v500, 6
      %v745 = vrot.slane %v501, 6
      %v746 = vrot.slane %v502, 6
      %v747 = vrot.slane %v503, 6
      %v748 = vrot.slane %v504, 6
      %v749 = vrot.slane %v505, 6
      %v750 = vrot.slane %v506, 6
      %v751 = vrot.slane %v507, 6
      %v752 = vsel %vm719, %v750, %v751
      %v753 = vsel %vm719, %v749, %v750
      %v754 = vsel %vm719, %v748, %v749
      %v755 = vsel %vm719, %v747, %v748
      %v756 = vsel %vm719, %v746, %v747
      %v757 = vsel %vm719, %v745, %v746
      %v758 = vsel %vm719, %v744, %v745
      %v759 = vsel %vm719, %v743, %v744
      %v760 = vsel %vm719, %v742, %v743
      %v761 = vsel %vm719, %v741, %v742
      %v762 = vsel %vm719, %v740, %v741
      %v763 = vsel %vm719, %v739, %v740
      %v764 = vsel %vm719, %v738, %v739
      %v765 = vsel %vm719, %v737, %v738
      %v766 = vsel %vm719, %v736, %v737
      %v767 = vsel %vm719, %v751, %v736
      %vm768 = vcmp.eq.s32.totalorder %v767, %v492
      %vm769 = vcmp.eq.s32.totalorder %v766, %v493
      %vm770 = vcmp.eq.s32.totalorder %v765, %v494
      %vm771 = vcmp.eq.s32.totalorder %v764, %v495
      %vm772 = vcmp.eq.s32.totalorder %v763, %v496
      %vm773 = vcmp.eq.s32.totalorder %v762, %v497
      %vm774 = vcmp.eq.s32.totalorder %v761, %v498
      %vm775 = vcmp.eq.s32.totalorder %v760, %v499
      %vm776 = vcmp.eq.s32.totalorder %v759, %v500
      %vm777 = vcmp.eq.s32.totalorder %v758, %v501
      %vm778 = vcmp.eq.s32.totalorder %v757, %v502
      %vm779 = vcmp.eq.s32.totalorder %v756, %v503
      %vm780 = vcmp.eq.s32.totalorder %v755, %v504
      %vm781 = vcmp.eq.s32.totalorder %v754, %v505
      %vm782 = vcmp.eq.s32.totalorder %v753, %v506
      %vm783 = vcmp.eq.s32.totalorder %v752, %v507
      %v784 = vmax.f32 %v687, %v735
      %v785 = vmax.f32 %v688, %v734
      %v786 = vmax.f32 %v689, %v733
      %v787 = vmax.f32 %v690, %v732
      %v788 = vmax.f32 %v691, %v731
      %v789 = vmax.f32 %v692, %v730
      %v790 = vmax.f32 %v693, %v729
      %v791 = vmax.f32 %v694, %v728
      %v792 = vmax.f32 %v695, %v727
      %v793 = vmax.f32 %v696, %v726
      %v794 = vmax.f32 %v697, %v725
      %v795 = vmax.f32 %v698, %v724
      %v796 = vmax.f32 %v699, %v723
      %v797 = vmax.f32 %v700, %v722
      %v798 = vmax.f32 %v701, %v721
      %v799 = vmax.f32 %v702, %v720
      %v800 = vsel %vm768, 1, 0
      %v801 = vsel %vm769, 1, 0
      %v802 = vsel %vm770, 1, 0
      %v803 = vsel %vm771, 1, 0
      %v804 = vsel %vm772, 1, 0
      %v805 = vsel %vm773, 1, 0
      %v806 = vsel %vm774, 1, 0
      %v807 = vsel %vm775, 1, 0
      %v808 = vsel %vm776, 1, 0
      %v809 = vsel %vm777, 1, 0
      %v810 = vsel %vm778, 1, 0
      %v811 = vsel %vm779, 1, 0
      %v812 = vsel %vm780, 1, 0
      %v813 = vsel %vm781, 1, 0
      %v814 = vsel %vm782, 1, 0
      %v815 = vsel %vm783, 1, 0
      %816 = vset.pattern.permute.xlu0 0
      %817 = vperm.xlu0 %816, %v800
      %v818 = vpop.permute.xlu0 %817
      %819 = vset.pattern.permute.xlu0 0
      %820 = vperm.xlu0 %819, %v801
      %v821 = vpop.permute.xlu0 %820
      %822 = vset.pattern.permute.xlu0 0
      %823 = vperm.xlu0 %822, %v802
      %v824 = vpop.permute.xlu0 %823
      %825 = vset.pattern.permute.xlu0 0
      %826 = vperm.xlu0 %825, %v803
      %v827 = vpop.permute.xlu0 %826
      %828 = vset.pattern.permute.xlu0 0
      %829 = vperm.xlu0 %828, %v804
      %v830 = vpop.permute.xlu0 %829
      %831 = vset.pattern.permute.xlu0 0
      %832 = vperm.xlu0 %831, %v805
      %v833 = vpop.permute.xlu0 %832
      %834 = vset.pattern.permute.xlu0 0
      %835 = vperm.xlu0 %834, %v806
      %v836 = vpop.permute.xlu0 %835
      %837 = vset.pattern.permute.xlu0 0
      %838 = vperm.xlu0 %837, %v807
      %v839 = vpop.permute.xlu0 %838
      %840 = vset.pattern.permute.xlu0 0
      %841 = vperm.xlu0 %840, %v808
      %v842 = vpop.permute.xlu0 %841
      %843 = vset.pattern.permute.xlu0 0
      %844 = vperm.xlu0 %843, %v809
      %v845 = vpop.permute.xlu0 %844
      %846 = vset.pattern.permute.xlu0 0
      %847 = vperm.xlu0 %846, %v810
      %v848 = vpop.permute.xlu0 %847
      %849 = vset.pattern.permute.xlu0 0
      %850 = vperm.xlu0 %849, %v811
      %v851 = vpop.permute.xlu0 %850
      %852 = vset.pattern.permute.xlu0 0
      %853 = vperm.xlu0 %852, %v812
      %v854 = vpop.permute.xlu0 %853
      %855 = vset.pattern.permute.xlu0 0
      %856 = vperm.xlu0 %855, %v813
      %v857 = vpop.permute.xlu0 %856
      %858 = vset.pattern.permute.xlu0 0
      %859 = vperm.xlu0 %858, %v814
      %v860 = vpop.permute.xlu0 %859
      %861 = vset.pattern.permute.xlu0 0
      %862 = vperm.xlu0 %861, %v815
      %v863 = vpop.permute.xlu0 %862
      %vm864 = vcmp.eq.s32.totalorder %v818, 1
      %vm865 = vcmp.eq.s32.totalorder %v821, 1
      %vm866 = vcmp.eq.s32.totalorder %v824, 1
      %vm867 = vcmp.eq.s32.totalorder %v827, 1
      %vm868 = vcmp.eq.s32.totalorder %v830, 1
      %vm869 = vcmp.eq.s32.totalorder %v833, 1
      %vm870 = vcmp.eq.s32.totalorder %v836, 1
      %vm871 = vcmp.eq.s32.totalorder %v839, 1
      %vm872 = vcmp.eq.s32.totalorder %v842, 1
      %vm873 = vcmp.eq.s32.totalorder %v845, 1
      %vm874 = vcmp.eq.s32.totalorder %v848, 1
      %vm875 = vcmp.eq.s32.totalorder %v851, 1
      %vm876 = vcmp.eq.s32.totalorder %v854, 1
      %vm877 = vcmp.eq.s32.totalorder %v857, 1
      %vm878 = vcmp.eq.s32.totalorder %v860, 1
      %vm879 = vcmp.eq.s32.totalorder %v863, 1
      %v880 = vsel %vm864, %v784, %v687
      %v881 = vsel %vm865, %v785, %v688
      %v882 = vsel %vm866, %v786, %v689
      %v883 = vsel %vm867, %v787, %v690
      %v884 = vsel %vm868, %v788, %v691
      %v885 = vsel %vm869, %v789, %v692
      %v886 = vsel %vm870, %v790, %v693
      %v887 = vsel %vm871, %v791, %v694
      %v888 = vsel %vm872, %v792, %v695
      %v889 = vsel %vm873, %v793, %v696
      %v890 = vsel %vm874, %v794, %v697
      %v891 = vsel %vm875, %v795, %v698
      %v892 = vsel %vm876, %v796, %v699
      %v893 = vsel %vm877, %v797, %v700
      %v894 = vsel %vm878, %v798, %v701
      %v895 = vsel %vm879, %v799, %v702
      %v896 = vrot.slane %v880, 4
      %v897 = vrot.slane %v881, 4
      %v898 = vrot.slane %v882, 4
      %v899 = vrot.slane %v883, 4
      %v900 = vrot.slane %v884, 4
      %v901 = vrot.slane %v885, 4
      %v902 = vrot.slane %v886, 4
      %v903 = vrot.slane %v887, 4
      %v904 = vrot.slane %v888, 4
      %v905 = vrot.slane %v889, 4
      %v906 = vrot.slane %v890, 4
      %v907 = vrot.slane %v891, 4
      %v908 = vrot.slane %v892, 4
      %v909 = vrot.slane %v893, 4
      %v910 = vrot.slane %v894, 4
      %v911 = vrot.slane %v895, 4
      %vm912 = vcmp.lt.s32.totalorder %v525, 4
      %v913 = vsel %vm912, %v910, %v911
      %v914 = vsel %vm912, %v909, %v910
      %v915 = vsel %vm912, %v908, %v909
      %v916 = vsel %vm912, %v907, %v908
      %v917 = vsel %vm912, %v906, %v907
      %v918 = vsel %vm912, %v905, %v906
      %v919 = vsel %vm912, %v904, %v905
      %v920 = vsel %vm912, %v903, %v904
      %v921 = vsel %vm912, %v902, %v903
      %v922 = vsel %vm912, %v901, %v902
      %v923 = vsel %vm912, %v900, %v901
      %v924 = vsel %vm912, %v899, %v900
      %v925 = vsel %vm912, %v898, %v899
      %v926 = vsel %vm912, %v897, %v898
      %v927 = vsel %vm912, %v896, %v897
      %v928 = vsel %vm912, %v911, %v896
      %v929 = vrot.slane %v492, 4
      %v930 = vrot.slane %v493, 4
      %v931 = vrot.slane %v494, 4
      %v932 = vrot.slane %v495, 4
      %v933 = vrot.slane %v496, 4
      %v934 = vrot.slane %v497, 4
      %v935 = vrot.slane %v498, 4
      %v936 = vrot.slane %v499, 4
      %v937 = vrot.slane %v500, 4
      %v938 = vrot.slane %v501, 4
      %v939 = vrot.slane %v502, 4
      %v940 = vrot.slane %v503, 4
      %v941 = vrot.slane %v504, 4
      %v942 = vrot.slane %v505, 4
      %v943 = vrot.slane %v506, 4
      %v944 = vrot.slane %v507, 4
      %v945 = vsel %vm912, %v943, %v944
      %v946 = vsel %vm912, %v942, %v943
      %v947 = vsel %vm912, %v941, %v942
      %v948 = vsel %vm912, %v940, %v941
      %v949 = vsel %vm912, %v939, %v940
      %v950 = vsel %vm912, %v938, %v939
      %v951 = vsel %vm912, %v937, %v938
      %v952 = vsel %vm912, %v936, %v937
      %v953 = vsel %vm912, %v935, %v936
      %v954 = vsel %vm912, %v934, %v935
      %v955 = vsel %vm912, %v933, %v934
      %v956 = vsel %vm912, %v932, %v933
      %v957 = vsel %vm912, %v931, %v932
      %v958 = vsel %vm912, %v930, %v931
      %v959 = vsel %vm912, %v929, %v930
      %v960 = vsel %vm912, %v944, %v929
      %vm961 = vcmp.eq.s32.totalorder %v960, %v492
      %vm962 = vcmp.eq.s32.totalorder %v959, %v493
      %vm963 = vcmp.eq.s32.totalorder %v958, %v494
      %vm964 = vcmp.eq.s32.totalorder %v957, %v495
      %vm965 = vcmp.eq.s32.totalorder %v956, %v496
      %vm966 = vcmp.eq.s32.totalorder %v955, %v497
      %vm967 = vcmp.eq.s32.totalorder %v954, %v498
      %vm968 = vcmp.eq.s32.totalorder %v953, %v499
      %vm969 = vcmp.eq.s32.totalorder %v952, %v500
      %vm970 = vcmp.eq.s32.totalorder %v951, %v501
      %vm971 = vcmp.eq.s32.totalorder %v950, %v502
      %vm972 = vcmp.eq.s32.totalorder %v949, %v503
      %vm973 = vcmp.eq.s32.totalorder %v948, %v504
      %vm974 = vcmp.eq.s32.totalorder %v947, %v505
      %vm975 = vcmp.eq.s32.totalorder %v946, %v506
      %vm976 = vcmp.eq.s32.totalorder %v945, %v507
      %v977 = vmax.f32 %v880, %v928
      %v978 = vmax.f32 %v881, %v927
      %v979 = vmax.f32 %v882, %v926
      %v980 = vmax.f32 %v883, %v925
      %v981 = vmax.f32 %v884, %v924
      %v982 = vmax.f32 %v885, %v923
      %v983 = vmax.f32 %v886, %v922
      %v984 = vmax.f32 %v887, %v921
      %v985 = vmax.f32 %v888, %v920
      %v986 = vmax.f32 %v889, %v919
      %v987 = vmax.f32 %v890, %v918
      %v988 = vmax.f32 %v891, %v917
      %v989 = vmax.f32 %v892, %v916
      %v990 = vmax.f32 %v893, %v915
      %v991 = vmax.f32 %v894, %v914
      %v992 = vmax.f32 %v895, %v913
      %v993 = vsel %vm961, 1, 0
      %v994 = vsel %vm962, 1, 0
      %v995 = vsel %vm963, 1, 0
      %v996 = vsel %vm964, 1, 0
      %v997 = vsel %vm965, 1, 0
      %v998 = vsel %vm966, 1, 0
      %v999 = vsel %vm967, 1, 0
      %v1000 = vsel %vm968, 1, 0
      %v1001 = vsel %vm969, 1, 0
      %v1002 = vsel %vm970, 1, 0
      %v1003 = vsel %vm971, 1, 0
      %v1004 = vsel %vm972, 1, 0
      %v1005 = vsel %vm973, 1, 0
      %v1006 = vsel %vm974, 1, 0
      %v1007 = vsel %vm975, 1, 0
      %v1008 = vsel %vm976, 1, 0
      %1009 = vset.pattern.permute.xlu0 0
      %1010 = vperm.xlu0 %1009, %v993
      %v1011 = vpop.permute.xlu0 %1010
      %1012 = vset.pattern.permute.xlu0 0
      %1013 = vperm.xlu0 %1012, %v994
      %v1014 = vpop.permute.xlu0 %1013
      %1015 = vset.pattern.permute.xlu0 0
      %1016 = vperm.xlu0 %1015, %v995
      %v1017 = vpop.permute.xlu0 %1016
      %1018 = vset.pattern.permute.xlu0 0
      %1019 = vperm.xlu0 %1018, %v996
      %v1020 = vpop.permute.xlu0 %1019
      %1021 = vset.pattern.permute.xlu0 0
      %1022 = vperm.xlu0 %1021, %v997
      %v1023 = vpop.permute.xlu0 %1022
      %1024 = vset.pattern.permute.xlu0 0
      %1025 = vperm.xlu0 %1024, %v998
      %v1026 = vpop.permute.xlu0 %1025
      %1027 = vset.pattern.permute.xlu0 0
      %1028 = vperm.xlu0 %1027, %v999
      %v1029 = vpop.permute.xlu0 %1028
      %1030 = vset.pattern.permute.xlu0 0
      %1031 = vperm.xlu0 %1030, %v1000
      %v1032 = vpop.permute.xlu0 %1031
      %1033 = vset.pattern.permute.xlu0 0
      %1034 = vperm.xlu0 %1033, %v1001
      %v1035 = vpop.permute.xlu0 %1034
      %1036 = vset.pattern.permute.xlu0 0
      %1037 = vperm.xlu0 %1036, %v1002
      %v1038 = vpop.permute.xlu0 %1037
      %1039 = vset.pattern.permute.xlu0 0
      %1040 = vperm.xlu0 %1039, %v1003
      %v1041 = vpop.permute.xlu0 %1040
      %1042 = vset.pattern.permute.xlu0 0
      %1043 = vperm.xlu0 %1042, %v1004
      %v1044 = vpop.permute.xlu0 %1043
      %1045 = vset.pattern.permute.xlu0 0
      %1046 = vperm.xlu0 %1045, %v1005
      %v1047 = vpop.permute.xlu0 %1046
      %1048 = vset.pattern.permute.xlu0 0
      %1049 = vperm.xlu0 %1048, %v1006
      %v1050 = vpop.permute.xlu0 %1049
      %1051 = vset.pattern.permute.xlu0 0
      %1052 = vperm.xlu0 %1051, %v1007
      %v1053 = vpop.permute.xlu0 %1052
      %1054 = vset.pattern.permute.xlu0 0
      %1055 = vperm.xlu0 %1054, %v1008
      %v1056 = vpop.permute.xlu0 %1055
      %vm1057 = vcmp.eq.s32.totalorder %v1011, 1
      %vm1058 = vcmp.eq.s32.totalorder %v1014, 1
      %vm1059 = vcmp.eq.s32.totalorder %v1017, 1
      %vm1060 = vcmp.eq.s32.totalorder %v1020, 1
      %vm1061 = vcmp.eq.s32.totalorder %v1023, 1
      %vm1062 = vcmp.eq.s32.totalorder %v1026, 1
      %vm1063 = vcmp.eq.s32.totalorder %v1029, 1
      %vm1064 = vcmp.eq.s32.totalorder %v1032, 1
      %vm1065 = vcmp.eq.s32.totalorder %v1035, 1
      %vm1066 = vcmp.eq.s32.totalorder %v1038, 1
      %vm1067 = vcmp.eq.s32.totalorder %v1041, 1
      %vm1068 = vcmp.eq.s32.totalorder %v1044, 1
      %vm1069 = vcmp.eq.s32.totalorder %v1047, 1
      %vm1070 = vcmp.eq.s32.totalorder %v1050, 1
      %vm1071 = vcmp.eq.s32.totalorder %v1053, 1
      %vm1072 = vcmp.eq.s32.totalorder %v1056, 1
      %v1073 = vsel %vm1057, %v977, %v880
      %v1074 = vsel %vm1058, %v978, %v881
      %v1075 = vsel %vm1059, %v979, %v882
      %v1076 = vsel %vm1060, %v980, %v883
      %v1077 = vsel %vm1061, %v981, %v884
      %v1078 = vsel %vm1062, %v982, %v885
      %v1079 = vsel %vm1063, %v983, %v886
      %v1080 = vsel %vm1064, %v984, %v887
      %v1081 = vsel %vm1065, %v985, %v888
      %v1082 = vsel %vm1066, %v986, %v889
      %v1083 = vsel %vm1067, %v987, %v890
      %v1084 = vsel %vm1068, %v988, %v891
      %v1085 = vsel %vm1069, %v989, %v892
      %v1086 = vsel %vm1070, %v990, %v893
      %v1087 = vsel %vm1071, %v991, %v894
      %v1088 = vsel %vm1072, %v992, %v895
      %v1089 = vld [vmem:[%s298] sm:$0x1]
      %v1090 = vlaneseq
      %v1091 = vand.u32 %v1090, 127
      %1092 = vrot.lane.b32.xlu0 %v1089, 127
      %v1093 = vpop.permute.xlu0 %1092
      %vm1094 = vcmp.ne.s32.totalorder %v1089, %v1093
      %vm1095 = vcmp.eq.s32.totalorder %v1091, 127
      %vm1096 = vmor %vm1094, %vm1095
      %v1097 = vadd.s32 %v525, 8
      %v1098 = vadd.s32 %v525, 16
      %v1099 = vadd.s32 %v525, 24
      %v1100 = vadd.s32 %v525, 32
      %v1101 = vadd.s32 %v525, 40
      %v1102 = vadd.s32 %v525, 48
      %v1103 = vadd.s32 %v525, 56
      %v1104 = vperm.slane %v1089, 0
      %vm1105 = vcmp.eq.s32.totalorder %v525, %v1104
      %vm1106 = vcmp.eq.s32.totalorder %v1097, %v1104
      %vm1107 = vcmp.eq.s32.totalorder %v1098, %v1104
      %vm1108 = vcmp.eq.s32.totalorder %v1099, %v1104
      %vm1109 = vcmp.eq.s32.totalorder %v1100, %v1104
      %vm1110 = vcmp.eq.s32.totalorder %v1101, %v1104
      %vm1111 = vcmp.eq.s32.totalorder %v1102, %v1104
      %vm1112 = vcmp.eq.s32.totalorder %v1103, %v1104
      %v1113 = vsel %vm1096, 1, 0
      %v1114 = vperm.slane %v1113, 0
      %vm1115 = vcmp.eq.s32.totalorder %v1114, 1
      %vm1116 = vmand %vm1105, %vm1115
      %vm1117 = vmand %vm1106, %vm1115
      %vm1118 = vmand %vm1107, %vm1115
      %vm1119 = vmand %vm1108, %vm1115
      %vm1120 = vmand %vm1109, %vm1115
      %vm1121 = vmand %vm1110, %vm1115
      %vm1122 = vmand %vm1111, %vm1115
      %vm1123 = vmand %vm1112, %vm1115
      %v1124 = vsel %vm1116, 1, 0
      %v1125 = vsel %vm1117, 1, 0
      %v1126 = vsel %vm1118, 1, 0
      %v1127 = vsel %vm1119, 1, 0
      %v1128 = vsel %vm1120, 1, 0
      %v1129 = vsel %vm1121, 1, 0
      %v1130 = vsel %vm1122, 1, 0
      %v1131 = vsel %vm1123, 1, 0
      %v1132 = vcvt.s32.f32 %v1124
      %v1133 = vcvt.s32.f32 %v1125
      %v1134 = vcvt.s32.f32 %v1126
      %v1135 = vcvt.s32.f32 %v1127
      %v1136 = vcvt.s32.f32 %v1128
      %v1137 = vcvt.s32.f32 %v1129
      %v1138 = vcvt.s32.f32 %v1130
      %v1139 = vcvt.s32.f32 %v1131
      %v1140 = vpack.c.bf16 %v1133, %v1132
      %v1141 = vpack.c.bf16 %v1135, %v1134
      %v1142 = vpack.c.bf16 %v1137, %v1136
      %v1143 = vpack.c.bf16 %v1139, %v1138
      %v1144 = vpack.c.bf16 %v1073, %v1073
      %v1145 = vpack.c.bf16 %v1074, %v1074
      %v1146 = vpack.c.bf16 %v1075, %v1075
      %v1147 = vpack.c.bf16 %v1076, %v1076
      %v1148 = vpack.c.bf16 %v1077, %v1077
      %v1149 = vpack.c.bf16 %v1078, %v1078
      %v1150 = vpack.c.bf16 %v1079, %v1079
      %v1151 = vpack.c.bf16 %v1080, %v1080
      %v1152 = vpack.c.bf16 %v1081, %v1081
      %v1153 = vpack.c.bf16 %v1082, %v1082
      %v1154 = vpack.c.bf16 %v1083, %v1083
      %v1155 = vpack.c.bf16 %v1084, %v1084
      %v1156 = vpack.c.bf16 %v1085, %v1085
      %v1157 = vpack.c.bf16 %v1086, %v1086
      %v1158 = vpack.c.bf16 %v1087, %v1087
      %v1159 = vpack.c.bf16 %v1088, %v1088
      %v1160 = vunpack.c.l.bf16 %v1144
      %v1161 = vunpack.c.l.bf16 %v1145
      %v1162 = vunpack.c.l.bf16 %v1146
      %v1163 = vunpack.c.l.bf16 %v1147
      %v1164 = vunpack.c.l.bf16 %v1148
      %v1165 = vunpack.c.l.bf16 %v1149
      %v1166 = vunpack.c.l.bf16 %v1150
      %v1167 = vunpack.c.l.bf16 %v1151
      %v1168 = vunpack.c.l.bf16 %v1152
      %v1169 = vunpack.c.l.bf16 %v1153
      %v1170 = vunpack.c.l.bf16 %v1154
      %v1171 = vunpack.c.l.bf16 %v1155
      %v1172 = vunpack.c.l.bf16 %v1156
      %v1173 = vunpack.c.l.bf16 %v1157
      %v1174 = vunpack.c.l.bf16 %v1158
      %v1175 = vunpack.c.l.bf16 %v1159
      %v1176 = vsub.f32 %v1073, %v1160
      %v1177 = vsub.f32 %v1074, %v1161
      %v1178 = vsub.f32 %v1075, %v1162
      %v1179 = vsub.f32 %v1076, %v1163
      %v1180 = vsub.f32 %v1077, %v1164
      %v1181 = vsub.f32 %v1078, %v1165
      %v1182 = vsub.f32 %v1079, %v1166
      %v1183 = vsub.f32 %v1080, %v1167
      %v1184 = vsub.f32 %v1081, %v1168
      %v1185 = vsub.f32 %v1082, %v1169
      %v1186 = vsub.f32 %v1083, %v1170
      %v1187 = vsub.f32 %v1084, %v1171
      %v1188 = vsub.f32 %v1085, %v1172
      %v1189 = vsub.f32 %v1086, %v1173
      %v1190 = vsub.f32 %v1087, %v1174
      %v1191 = vsub.f32 %v1088, %v1175
      %v1192 = vpack.c.bf16 %v1177, %v1176
      %v1193 = vpack.c.bf16 %v1179, %v1178
      %v1194 = vpack.c.bf16 %v1181, %v1180
      %v1195 = vpack.c.bf16 %v1183, %v1182
      %v1196 = vpack.c.bf16 %v1185, %v1184
      %v1197 = vpack.c.bf16 %v1187, %v1186
      %v1198 = vpack.c.bf16 %v1189, %v1188
      %v1199 = vpack.c.bf16 %v1191, %v1190
      %1200 = vmatpush.bf16.msra.mxu0 %v1199
      %1201 = vmatpush.bf16.msra.mxu0 %v1198
      %1202 = vmatpush.bf16.msra.mxu0 %v1197
      %1203 = vmatpush.bf16.msra.mxu0 %v1196
      %1204 = vmatpush.bf16.msra.mxu0 %v1195
      %1205 = vmatpush.bf16.msra.mxu0 %v1194
      %1206 = vmatpush.bf16.msra.mxu0 %v1193
      %1207 = vmatpush.bf16.msra.mxu0 %v1192
      %1208 = vmatmul.bf16.gmra.mxu0 %v1140
      %v1209 = vpop.f32.mrf.mxu0
      %v1210 = vadd.f32 0.0, %v1209
      %v1211 = vpop.f32.mrf.mxu0
      %v1212 = vadd.f32 0.0, %v1211
      %1213 = vmatmul.bf16.gmra.mxu0 %v1141
      %v1214 = vpop.f32.mrf.mxu0
      %v1215 = vadd.f32 0.0, %v1214
      %v1216 = vpop.f32.mrf.mxu0
      %v1217 = vadd.f32 0.0, %v1216
      %1218 = vmatmul.bf16.gmra.mxu0 %v1142
      %v1219 = vpop.f32.mrf.mxu0
      %v1220 = vadd.f32 0.0, %v1219
      %v1221 = vpop.f32.mrf.mxu0
      %v1222 = vadd.f32 0.0, %v1221
      %1223 = vmatmul.bf16.gmra.mxu0 %v1143
      %v1224 = vpop.f32.mrf.mxu0
      %v1225 = vadd.f32 0.0, %v1224
      %v1226 = vpop.f32.mrf.mxu0
      %v1227 = vadd.f32 0.0, %v1226
      %1228 = vdwg.mxu0
      %v1245 = vunpack.c.l.b16 %v1144
      %v1246 = vunpack.c.l.b16 %v1145
      %v1247 = vunpack.c.l.b16 %v1146
      %v1248 = vunpack.c.l.b16 %v1147
      %v1249 = vunpack.c.l.b16 %v1148
      %v1250 = vunpack.c.l.b16 %v1149
      %v1251 = vunpack.c.l.b16 %v1150
      %v1252 = vunpack.c.l.b16 %v1151
      %v1253 = vunpack.c.l.b16 %v1152
      %v1254 = vunpack.c.l.b16 %v1153
      %v1255 = vunpack.c.l.b16 %v1154
      %v1256 = vunpack.c.l.b16 %v1155
      %v1257 = vunpack.c.l.b16 %v1156
      %v1258 = vunpack.c.l.b16 %v1157
      %v1259 = vunpack.c.l.b16 %v1158
      %v1260 = vunpack.c.l.b16 %v1159
      %v1261 = vpack.c.b16 %v1246, %v1245
      %v1262 = vpack.c.b16 %v1248, %v1247
      %v1263 = vpack.c.b16 %v1250, %v1249
      %v1264 = vpack.c.b16 %v1252, %v1251
      %v1265 = vpack.c.b16 %v1254, %v1253
      %v1266 = vpack.c.b16 %v1256, %v1255
      %v1267 = vpack.c.b16 %v1258, %v1257
      %v1268 = vpack.c.b16 %v1260, %v1259
      %1277 = vmatpush.bf16.msra.mxu0 %v1268
      %1278 = vmatpush.bf16.msra.mxu0 %v1267
      %1279 = vmatpush.bf16.msra.mxu0 %v1266
      %1280 = vmatpush.bf16.msra.mxu0 %v1265
      %1281 = vmatpush.bf16.msra.mxu0 %v1264
      %1282 = vmatpush.bf16.msra.mxu0 %v1263
      %1283 = vmatpush.bf16.msra.mxu0 %v1262
      %1284 = vmatpush.bf16.msra.mxu0 %v1261
      %1285 = vmatmul.bf16.gmra.mxu0 %v1140
      %v1286 = vpop.f32.mrf.mxu0
      %v1287 = vadd.f32 %v1210, %v1286
      %v1288 = vpop.f32.mrf.mxu0
      %v1289 = vadd.f32 %v1212, %v1288
      %1290 = vmatmul.bf16.gmra.mxu0 %v1141
      %v1291 = vpop.f32.mrf.mxu0
      %v1292 = vadd.f32 %v1215, %v1291
      %v1293 = vpop.f32.mrf.mxu0
      %v1294 = vadd.f32 %v1217, %v1293
      %1295 = vmatmul.bf16.gmra.mxu0 %v1142
      %v1296 = vpop.f32.mrf.mxu0
      %v1297 = vadd.f32 %v1220, %v1296
      %v1298 = vpop.f32.mrf.mxu0
      %v1299 = vadd.f32 %v1222, %v1298
      %1300 = vmatmul.bf16.gmra.mxu0 %v1143
      %v1301 = vpop.f32.mrf.mxu0
      %v1302 = vadd.f32 %v1225, %v1301
      %v1303 = vpop.f32.mrf.mxu0
      %v1304 = vadd.f32 %v1227, %v1303
      %1305 = vdwg.mxu0
      %v1306 = vld [vmem:[%s326] sm:$0xff]
      %v1307 = vld [vmem:[%s326 + $0x8] sm:$0xff]
      %v1308 = vld [vmem:[%s326 + $0x10] sm:$0xff]
      %v1309 = vld [vmem:[%s326 + $0x18] sm:$0xff]
      %v1310 = vld [vmem:[%s326 + $0x20] sm:$0xff]
      %v1311 = vld [vmem:[%s326 + $0x28] sm:$0xff]
      %v1312 = vld [vmem:[%s326 + $0x30] sm:$0xff]
      %v1313 = vld [vmem:[%s326 + $0x38] sm:$0xff]
      %v1314 = vadd.f32 %v1306, %v1287
      %v1315 = vadd.f32 %v1307, %v1289
      %v1316 = vadd.f32 %v1308, %v1292
      %v1317 = vadd.f32 %v1309, %v1294
      %v1318 = vadd.f32 %v1310, %v1297
      %v1319 = vadd.f32 %v1311, %v1299
      %v1320 = vadd.f32 %v1312, %v1302
      %v1321 = vadd.f32 %v1313, %v1304
      %vm1322 = vcmask 261120
      %1323 = vst.msk [vmem:[%s326] sm:$0xff] %vm1322, %v1314
      %1324 = vst.msk [vmem:[%s326 + $0x8] sm:$0xff] %vm1322, %v1315
      %1325 = vst.msk [vmem:[%s326 + $0x10] sm:$0xff] %vm1322, %v1316
      %1326 = vst.msk [vmem:[%s326 + $0x18] sm:$0xff] %vm1322, %v1317
      %1327 = vst.msk [vmem:[%s326 + $0x20] sm:$0xff] %vm1322, %v1318
      %1328 = vst.msk [vmem:[%s326 + $0x28] sm:$0xff] %vm1322, %v1319
      %1329 = vst.msk [vmem:[%s326 + $0x30] sm:$0xff] %vm1322, %v1320
      %1330 = vst.msk [vmem:[%s326 + $0x38] sm:$0xff] %vm1322, %v1321
      %s1331 = sld [smem:[#allocation3 + %s30]]
      %s1332 = smul.u32 8, %s1331
      %p1333 = scmp.lt.s32.totalorder %s1332, 15
      %s1334 = scalar_select %p1333, %s1332, 15
      %p1335 = scmp.lt.s32.totalorder %s29, 0
      %s1336 = scalar_select %p1335, %s29, 0
      %s1337 = sadd.s32 %s1336, %s1334
      %s1338 = smul.addr %s1337, 8
      %s1339 = scalar_lea.vmem %s6, %s1338
      // Predicated region
      $region45: #{tpu_custom_call.1} parent=39 // pred_check
        %p1340 = pneg %p189
      $region46: #{tpu_custom_call.1} parent=39 // pred_check_branch
        %1342 = sbr.rel (%p1340) target = $region48
      $region47: #{tpu_custom_call.1} parent=39 // pred_region
        %s1343 = sld [smem:[#allocation3 + %s30]]
        %s1344 = smul.u32 8, %s1343
      $region48: #{tpu_custom_call.1} parent=39 // pred_fallthru
        _
    $region40: #{tpu_custom_call.1} parent=5 // pred_fallthru
      _
    %p1345 = scmp.le.s32.totalorder 2, %s20
    // Predicated region
    $region49: #{tpu_custom_call.1} parent=5 // pred_check
      %p1346 = pneg %p1345
    $region50: #{tpu_custom_call.1} parent=5 // pred_check_branch
      %1348 = sbr.rel (%p1346) target = $region52
    $region51: #{tpu_custom_call.1} parent=5 // pred_region
      %s1349 = ssub.s32 %s20, 2
      // Predicated region
      $region53: #{tpu_custom_call.1} parent=51 // pred_check
        %p1350 = pneg %p195
      $region54: #{tpu_custom_call.1} parent=51 // pred_check_branch
        %1352 = sbr.rel (%p1350) target = $region56
      $region55: #{tpu_custom_call.1} parent=51 // pred_region
        %s1353 = sld [smem:[#allocation3 + %s32]]
        %s1354 = smul.u32 8, %s1353
        %p1355 = scmp.lt.s32.totalorder %s1354, 15
        %s1356 = scalar_select %p1355, %s1354, 15
        %p1357 = scmp.lt.s32.totalorder %s31, 0
        %s1358 = scalar_select %p1357, %s31, 0
        %s1359 = sadd.s32 %s1358, %s1356
        %s1360 = smul.addr %s1359, 8
        %s1361 = scalar_lea.vmem %s6, %s1360
      $region56: #{tpu_custom_call.1} parent=51 // pred_fallthru
        _
    $region52: #{tpu_custom_call.1} parent=5 // pred_fallthru
      _
  $region6: #{tpu_custom_call.1} parent=0 // loop_footer
    %s24 = sadd.s32 1, %s20
  $region7: #{tpu_custom_call.1} parent=0 // loop_footer_branch
    %19 = sbr.rel target = $region3
  $region8: #{tpu_custom_call.1} parent=0 // loop_exit
    _

</llo_original>
